<compile_context>
chip_gen: v7x
topology: tpu7x:2x2x1
jax: 0.10.0
libtpu: 0.0.40
codegen_flags: <defaults>
</compile_context>

<pallas_src>
import functools

import jax
import jax.numpy as jnp
from jax.experimental import pallas as pl
from jax.experimental.pallas import tpu as pltpu

LN_EPS = 1e-5  # PyTorch nn.LayerNorm default


def _round_up(x, m):
    return (x + m - 1) // m * m


def _default_feature_align():
    """256 on v6e/v7x (256x256 MXU), 128 otherwise (v5e/v4 are 128-wide)."""
    try:
        kind = jax.devices()[0].device_kind.lower()
    except Exception:
        return 128
    if "v6" in kind or "v7" in kind or "7x" in kind:
        return 256
    return 128


def _vmem_capacity_bytes():
    try:
        return int(pltpu.get_tpu_info().vmem_capacity_bytes)
    except Exception:
        pass
    try:
        kind = jax.devices()[0].device_kind.lower()
    except Exception:
        kind = ""
    return (64 << 20) if "7" in kind else (128 << 20)


def _ln_center_scale(x, real_d):
    """(x - mean) * rsqrt(var + eps), normalizing by the REAL (unpadded) dim.

    gamma/beta are folded into the following matmul at pack time. Padded columns of x are
    zero, so the single-pass sums over the padded width equal the sums over the valid width.
    Padded lanes of the result are (-mean * inv) but multiply zero rows of the folded
    weight, so they never leak into real outputs.
    """
    s1 = jnp.sum(x, axis=-1, keepdims=True)
    s2 = jnp.sum(x * x, axis=-1, keepdims=True)
    inv_d = 1.0 / float(real_d)
    mean = s1 * inv_d
    var = jnp.maximum(s2 * inv_d - mean * mean, 0.0)
    return (x - mean) * jax.lax.rsqrt(var + LN_EPS)


def _silu(x):
    return x * jax.nn.sigmoid(x)


def noise_pred_kernel(
    obs_ref,        # (tile_b, in_p)  io_dtype (bf16 by default)
    bias_ref,       # (3, hid_p)      f32   rows: [fc1_b', b0_b', b1_b']  (LN-beta folded in)
    fc2_b_ref,      # (1, out_p)      f32   (LN2-beta folded in)
    fc1_w_ref,      # (in_p, hid_p)   bf16  (LN1-gamma folded in)
    b0_w_ref,       # (hid_p, hid_p)  bf16
    b1_w_ref,       # (hid_p, hid_p)  bf16
    fc2_w_ref,      # (hid_p, out_p)  bf16
    out_ref,        # (tile_b, out_p)
    *,
    in_dim,
    hidden_dim,
):
    x = obs_ref[...].astype(jnp.float32)

    fc1_b = bias_ref[0:1, :]
    b0_b = bias_ref[1:2, :]
    b1_b = bias_ref[2:3, :]
    wdt = fc1_w_ref.dtype

    # --- stem: LayerNorm -> Linear -> SiLU (gamma/beta folded into fc1_w / fc1_b) ---
    xn = _ln_center_scale(x, in_dim)
    x = jnp.dot(xn.astype(wdt), fc1_w_ref[...], preferred_element_type=jnp.float32) + fc1_b
    x = _silu(x)

    # --- MLPResNetBlock 0: x = x + SiLU(Linear(LayerNorm(x))) ---
    h = _ln_center_scale(x, hidden_dim)
    h = jnp.dot(h.astype(wdt), b0_w_ref[...], preferred_element_type=jnp.float32) + b0_b
    x = x + _silu(h)

    # --- MLPResNetBlock 1 ---
    h = _ln_center_scale(x, hidden_dim)
    h = jnp.dot(h.astype(wdt), b1_w_ref[...], preferred_element_type=jnp.float32) + b1_b
    x = x + _silu(h)

    # --- head: LayerNorm -> Linear(hidden -> action_dim, lane-padded to out_p) ---
    h = _ln_center_scale(x, hidden_dim)
    out = jnp.dot(h.astype(wdt), fc2_w_ref[...], preferred_element_type=jnp.float32) + fc2_b_ref[...]
    out_ref[...] = out.astype(out_ref.dtype)


def prepare_params(params, *, weight_dtype=jnp.bfloat16, feat_align=None, out_align=128):
    """Fold LayerNorm affine params into weights/biases, pad, cast, and cache.

    Call ONCE and reuse the returned dict across forward calls; this keeps the full-size
    pad/cast passes over every weight out of the inference hot path.
    """
    if feat_align is None:
        feat_align = _default_feature_align()

    in_dim, hidden_dim = params["fc1_w"].shape
    action_dim = params["fc2_w"].shape[1]
    in_p = _round_up(in_dim, feat_align)
    hid_p = _round_up(hidden_dim, feat_align)
    out_p = _round_up(action_dim, out_align)

    f32 = jnp.float32

    def fold(g, b, w, bias):
        # LN(x)@W + bias == ((x-mean)*inv) @ (g[:,None]*W) + (b@W + bias)
        g = g.astype(f32); b = b.astype(f32); w = w.astype(f32); bias = bias.astype(f32)
        return g[:, None] * w, b @ w + bias

    fc1_w, fc1_b = fold(params["ln1_g"], params["ln1_b"], params["fc1_w"], params["fc1_b"])
    b0_w, b0_b = fold(params["b0_ln_g"], params["b0_ln_b"], params["b0_w"], params["b0_b"])
    b1_w, b1_b = fold(params["b1_ln_g"], params["b1_ln_b"], params["b1_w"], params["b1_b"])
    fc2_w, fc2_b = fold(params["ln2_g"], params["ln2_b"], params["fc2_w"], params["fc2_b"])

    def pad2(w, r, c):
        return jnp.pad(w, ((0, r - w.shape[0]), (0, c - w.shape[1]))).astype(weight_dtype)

    def pad1(v, n):
        return jnp.pad(v, (0, n - v.shape[0]))

    return {
        "fc1_w": pad2(fc1_w, in_p, hid_p),
        "b0_w": pad2(b0_w, hid_p, hid_p),
        "b1_w": pad2(b1_w, hid_p, hid_p),
        "fc2_w": pad2(fc2_w, hid_p, out_p),
        "bias": jnp.stack([pad1(fc1_b, hid_p), pad1(b0_b, hid_p), pad1(b1_b, hid_p)]),
        "fc2_b": pad1(fc2_b, out_p).reshape(1, out_p),
        "meta": dict(in_dim=in_dim, hidden_dim=hidden_dim, action_dim=action_dim,
                     in_p=in_p, hid_p=hid_p, out_p=out_p,
                     weight_itemsize=jnp.dtype(weight_dtype).itemsize),
    }


def noise_prediction_model(obs, params, *, tile_b=None, io_dtype=jnp.bfloat16,
                           out_dtype=jnp.float32, weight_dtype=jnp.bfloat16):
    """obs: (B, transformer_hidden_dim). `params` may be raw (init_params format) or the
    packed dict from prepare_params() (preferred for repeated inference). Returns (B, action_dim)."""
    if "meta" not in params:
        params = prepare_params(params, weight_dtype=weight_dtype)
    meta = params["meta"]
    in_dim, hidden_dim, action_dim = meta["in_dim"], meta["hidden_dim"], meta["action_dim"]
    in_p, hid_p, out_p = meta["in_p"], meta["hid_p"], meta["out_p"]

    B = obs.shape[0]
    assert obs.shape[1] == in_dim

    io_dtype = jnp.dtype(io_dtype if io_dtype is not None else obs.dtype)
    out_dtype = jnp.dtype(out_dtype)
    # Sublane alignment: 8 rows for f32 tiles, 16 for bf16 (packed sublanes).
    row_align = max(8, 32 // io_dtype.itemsize)
    if tile_b is None:
        tile_b = min(_round_up(B, row_align), 512)
    tile_b = _round_up(tile_b, row_align)
    B_p = _round_up(B, tile_b)
    grid = (B_p // tile_b,)

    # Stream obs in io_dtype (bf16 halves the dominant HBM read); upcast to f32 in-kernel.
    obs_p = jnp.pad(obs.astype(io_dtype), ((0, B_p - B), (0, in_p - in_dim)))

    wbytes = meta["weight_itemsize"]
    cap = _vmem_capacity_bytes()

    def vmem_limit(weight_buffers):
        weight_bytes = (in_p * hid_p + 2 * hid_p * hid_p + hid_p * out_p) * wbytes
        param_bytes = (3 * hid_p + out_p) * 4
        stream = 2 * tile_b * (in_p * io_dtype.itemsize + out_p * out_dtype.itemsize)
        act = 4 * tile_b * hid_p * 4                       # live f32 activations
        mm_tmp = 2 * tile_b * max(in_p, hid_p) * wbytes    # bf16 matmul-input casts
        est = weight_buffers * (weight_bytes + param_bytes) + stream + act + mm_tmp + (8 << 20)
        return int(min(max(est, 32 << 20), int(cap * 0.87)))

    kernel = functools.partial(noise_pred_kernel, in_dim=in_dim, hidden_dim=hidden_dim)

    def run(single_buffer_weights):
        def rep_spec(shape):
            # Grid-invariant operand: full block, constant index_map. Single-buffered when
            # supported (it never changes across grid steps, so double-buffering is waste).
            idx = lambda i, _n=len(shape): (0,) * _n
            if single_buffer_weights:
                return pl.BlockSpec(shape, idx, pipeline_mode=pl.Buffered(1))
            return pl.BlockSpec(shape, idx)

        in_specs = [
            pl.BlockSpec((tile_b, in_p), lambda i: (i, 0)),  # obs tiles over batch
            rep_spec((3, hid_p)),
            rep_spec((1, out_p)),
            rep_spec((in_p, hid_p)),
            rep_spec((hid_p, hid_p)),
            rep_spec((hid_p, hid_p)),
            rep_spec((hid_p, out_p)),
        ]
        out_specs = pl.BlockSpec((tile_b, out_p), lambda i: (i, 0))

        return pl.pallas_call(
            kernel,
            out_shape=jax.ShapeDtypeStruct((B_p, out_p), out_dtype),
            grid_spec=pltpu.PrefetchScalarGridSpec(
                num_scalar_prefetch=0,
                grid=grid,
                in_specs=in_specs,
                out_specs=out_specs,
            ),
            compiler_params=pltpu.CompilerParams(
                dimension_semantics=("parallel",),
                vmem_limit_bytes=vmem_limit(1 if single_buffer_weights else 2),
            ),
        )(obs_p, params["bias"], params["fc2_b"],
          params["fc1_w"], params["b0_w"], params["b1_w"], params["fc2_w"])

    try:
        out = run(single_buffer_weights=True)
    except Exception:
        # pl.Buffered(1) unsupported in this build -> default double-buffered weights.
        out = run(single_buffer_weights=False)

    return out[:B, :action_dim].astype(obs.dtype)


def init_params(key, transformer_hidden_dim, hidden_dim, action_dim=7):
    ks = jax.random.split(key, 8)
    scale_in = 1.0 / jnp.sqrt(transformer_hidden_dim)
    scale_h = 1.0 / jnp.sqrt(hidden_dim)
    p = {
        # MLPResNet.layer_norm1
        "ln1_g": jnp.ones((transformer_hidden_dim,), jnp.float32),
        "ln1_b": jnp.zeros((transformer_hidden_dim,), jnp.float32),
        # MLPResNet.fc1 (stored as (in, out))
        "fc1_w": jax.random.uniform(ks[0], (transformer_hidden_dim, hidden_dim),
                                    jnp.float32, -scale_in, scale_in),
        "fc1_b": jax.random.uniform(ks[1], (hidden_dim,), jnp.float32, -scale_in, scale_in),
        # block 0: LayerNorm + Linear
        "b0_ln_g": jnp.ones((hidden_dim,), jnp.float32),
        "b0_ln_b": jnp.zeros((hidden_dim,), jnp.float32),
        "b0_w": jax.random.uniform(ks[2], (hidden_dim, hidden_dim),
                                   jnp.float32, -scale_h, scale_h),
        "b0_b": jax.random.uniform(ks[3], (hidden_dim,), jnp.float32, -scale_h, scale_h),
        # block 1
        "b1_ln_g": jnp.ones((hidden_dim,), jnp.float32),
        "b1_ln_b": jnp.zeros((hidden_dim,), jnp.float32),
        "b1_w": jax.random.uniform(ks[4], (hidden_dim, hidden_dim),
                                   jnp.float32, -scale_h, scale_h),
        "b1_b": jax.random.uniform(ks[5], (hidden_dim,), jnp.float32, -scale_h, scale_h),
        # MLPResNet.layer_norm2 + fc2
        "ln2_g": jnp.ones((hidden_dim,), jnp.float32),
        "ln2_b": jnp.zeros((hidden_dim,), jnp.float32),
        "fc2_w": jax.random.uniform(ks[6], (hidden_dim, action_dim),
                                    jnp.float32, -scale_h, scale_h),
        "fc2_b": jax.random.uniform(ks[7], (action_dim,), jnp.float32, -scale_h, scale_h),
    }
    return p


def reference_forward(obs, p):
    """Pure-JAX f32 reference of the PyTorch forward pass (for sanity checking)."""
    def ln(x, g, b):
        m = jnp.mean(x, -1, keepdims=True)
        v = jnp.mean((x - m) ** 2, -1, keepdims=True)
        return (x - m) / jnp.sqrt(v + LN_EPS) * g + b

    silu = lambda x: x * jax.nn.sigmoid(x)
    x = ln(obs, p["ln1_g"], p["ln1_b"])
    x = silu(x @ p["fc1_w"] + p["fc1_b"])
    x = x + silu(ln(x, p["b0_ln_g"], p["b0_ln_b"]) @ p["b0_w"] + p["b0_b"])
    x = x + silu(ln(x, p["b1_ln_g"], p["b1_ln_b"]) @ p["b1_w"] + p["b1_b"])
    x = ln(x, p["ln2_g"], p["ln2_b"])
    return x @ p["fc2_w"] + p["fc2_b"]


if __name__ == "__main__":
    B = 8
    TRANSFORMER_HIDDEN_DIM = 32
    HIDDEN_DIM = 32
    ACTION_DIM = 7

    key = jax.random.PRNGKey(0)
    k_obs, k_params = jax.random.split(key)
    obs = jax.random.normal(k_obs, (B, TRANSFORMER_HIDDEN_DIM), jnp.float32)
    params = init_params(k_params, TRANSFORMER_HIDDEN_DIM, HIDDEN_DIM, ACTION_DIM)

    # Pack once (LN folding + padding + bf16 cast), reuse across calls.
    packed = prepare_params(params)

    out = noise_prediction_model(obs, packed)
    out = jax.block_until_ready(out)

    ref = reference_forward(obs, params)
    assert out.shape == (B, ACTION_DIM)
    # Kernel streams obs and runs its matmuls in bf16 with f32 accumulation, so compare
    # with a tolerance appropriate for bf16 operand rounding.
    assert jnp.allclose(out, ref, atol=3e-2, rtol=3e-2), (
        "mismatch vs. pure-JAX reference: max abs diff = "
        f"{float(jnp.max(jnp.abs(out - ref)))}"
    )

    print("KERNEL_OK")
</pallas_src>

<mosaic_0001>
module attributes {stable_mosaic.version = 11 : i64} {
  func.func @noise_pred_kernel(%arg0: i32, %arg1: memref<16x128xbf16, #tpu.memory_space<vmem>>, %arg2: memref<3x128xf32, #tpu.memory_space<vmem>>, %arg3: memref<1x128xf32, #tpu.memory_space<vmem>>, %arg4: memref<128x128xbf16, #tpu.memory_space<vmem>>, %arg5: memref<128x128xbf16, #tpu.memory_space<vmem>>, %arg6: memref<128x128xbf16, #tpu.memory_space<vmem>>, %arg7: memref<128x128xbf16, #tpu.memory_space<vmem>>, %arg8: memref<16x128xf32, #tpu.memory_space<vmem>>) attributes {dimension_semantics = [#tpu.dimension_semantics<parallel>], iteration_bounds = array<i64: 1>, scalar_prefetch = 0 : i64, scratch_operands = 0 : i64, tpu.core_type = #tpu.core_type<tc>, window_params = [{transform_indices = @transform_0, window_bounds = array<i64: 16, 128>}, {pipeline_mode = #tpu.pipeline_mode<synchronous>, transform_indices = @transform_1, window_bounds = array<i64: 3, 128>}, {pipeline_mode = #tpu.pipeline_mode<synchronous>, transform_indices = @transform_2, window_bounds = array<i64: 1, 128>}, {pipeline_mode = #tpu.pipeline_mode<synchronous>, transform_indices = @transform_3, window_bounds = array<i64: 128, 128>}, {pipeline_mode = #tpu.pipeline_mode<synchronous>, transform_indices = @transform_4, window_bounds = array<i64: 128, 128>}, {pipeline_mode = #tpu.pipeline_mode<synchronous>, transform_indices = @transform_5, window_bounds = array<i64: 128, 128>}, {pipeline_mode = #tpu.pipeline_mode<synchronous>, transform_indices = @transform_6, window_bounds = array<i64: 128, 128>}, {transform_indices = @transform_7, window_bounds = array<i64: 16, 128>}]} {
    %c0 = arith.constant 0 : index
    %c0_0 = arith.constant 0 : index
    %0 = vector.load %arg1[%c0, %c0_0] : memref<16x128xbf16, #tpu.memory_space<vmem>>, vector<16x128xbf16>
    %1 = arith.extf %0 : vector<16x128xbf16> to vector<16x128xf32>
    %c0_1 = arith.constant 0 : index
    %c0_2 = arith.constant 0 : index
    %2 = vector.load %arg2[%c0_1, %c0_2] : memref<3x128xf32, #tpu.memory_space<vmem>>, vector<1x128xf32>
    %c1 = arith.constant 1 : index
    %c0_3 = arith.constant 0 : index
    %3 = vector.load %arg2[%c1, %c0_3] : memref<3x128xf32, #tpu.memory_space<vmem>>, vector<1x128xf32>
    %c2 = arith.constant 2 : index
    %c0_4 = arith.constant 0 : index
    %4 = vector.load %arg2[%c2, %c0_4] : memref<3x128xf32, #tpu.memory_space<vmem>>, vector<1x128xf32>
    %cst = arith.constant dense<0.000000e+00> : vector<16xf32>
    %5 = vector.multi_reduction <add>, %1, %cst [1] : vector<16x128xf32> to vector<16xf32>
    %6 = vector.shape_cast %5 : vector<16xf32> to vector<16x1xf32>
    %7 = arith.mulf %1, %1 : vector<16x128xf32>
    %cst_5 = arith.constant dense<0.000000e+00> : vector<16xf32>
    %8 = vector.multi_reduction <add>, %7, %cst_5 [1] : vector<16x128xf32> to vector<16xf32>
    %9 = vector.shape_cast %8 : vector<16xf32> to vector<16x1xf32>
    %cst_6 = arith.constant 3.125000e-02 : f32
    %10 = vector.broadcast %cst_6 : f32 to vector<16x1xf32>
    %11 = arith.mulf %6, %10 : vector<16x1xf32>
    %cst_7 = arith.constant 3.125000e-02 : f32
    %12 = vector.broadcast %cst_7 : f32 to vector<16x1xf32>
    %13 = arith.mulf %9, %12 : vector<16x1xf32>
    %14 = arith.mulf %11, %11 : vector<16x1xf32>
    %15 = arith.subf %13, %14 : vector<16x1xf32>
    %cst_8 = arith.constant 0.000000e+00 : f32
    %16 = vector.broadcast %cst_8 : f32 to vector<16x1xf32>
    %17 = arith.maximumf %15, %16 : vector<16x1xf32>
    %18 = vector.broadcast %11 : vector<16x1xf32> to vector<16x128xf32>
    %19 = arith.subf %1, %18 : vector<16x128xf32>
    %cst_9 = arith.constant 9.99999974E-6 : f32
    %20 = vector.broadcast %cst_9 : f32 to vector<16x1xf32>
    %21 = arith.addf %17, %20 : vector<16x1xf32>
    %22 = math.rsqrt %21 : vector<16x1xf32>
    %23 = vector.broadcast %22 : vector<16x1xf32> to vector<16x128xf32>
    %24 = arith.mulf %19, %23 : vector<16x128xf32>
    %25 = arith.truncf %24 : vector<16x128xf32> to vector<16x128xbf16>
    %c0_10 = arith.constant 0 : index
    %c0_11 = arith.constant 0 : index
    %26 = vector.load %arg4[%c0_10, %c0_11] : memref<128x128xbf16, #tpu.memory_space<vmem>>, vector<128x128xbf16>
    %cst_12 = arith.constant dense<0.000000e+00> : vector<16x128xf32>
    %27 = tpu.matmul %25, %26, %cst_12 {dimension_numbers = #tpu.dot_dimension_numbers<[1], [0], [0], [1], [0, 0, 1, 1], [], []>} : vector<16x128xbf16>, vector<128x128xbf16>, vector<16x128xf32> -> vector<16x128xf32>
    %28 = vector.broadcast %2 : vector<1x128xf32> to vector<16x128xf32>
    %29 = arith.addf %27, %28 : vector<16x128xf32>
    %30 = arith.negf %29 : vector<16x128xf32>
    %31 = math.exp %30 : vector<16x128xf32>
    %cst_13 = arith.constant 1.000000e+00 : f32
    %32 = vector.broadcast %cst_13 : f32 to vector<16x128xf32>
    %33 = arith.addf %32, %31 : vector<16x128xf32>
    %34 = arith.divf %32, %33 : vector<16x128xf32>
    %35 = arith.mulf %29, %34 : vector<16x128xf32>
    %cst_14 = arith.constant dense<0.000000e+00> : vector<16xf32>
    %36 = vector.multi_reduction <add>, %35, %cst_14 [1] : vector<16x128xf32> to vector<16xf32>
    %37 = vector.shape_cast %36 : vector<16xf32> to vector<16x1xf32>
    %38 = arith.mulf %35, %35 : vector<16x128xf32>
    %cst_15 = arith.constant dense<0.000000e+00> : vector<16xf32>
    %39 = vector.multi_reduction <add>, %38, %cst_15 [1] : vector<16x128xf32> to vector<16xf32>
    %40 = vector.shape_cast %39 : vector<16xf32> to vector<16x1xf32>
    %cst_16 = arith.constant 3.125000e-02 : f32
    %41 = vector.broadcast %cst_16 : f32 to vector<16x1xf32>
    %42 = arith.mulf %37, %41 : vector<16x1xf32>
    %cst_17 = arith.constant 3.125000e-02 : f32
    %43 = vector.broadcast %cst_17 : f32 to vector<16x1xf32>
    %44 = arith.mulf %40, %43 : vector<16x1xf32>
    %45 = arith.mulf %42, %42 : vector<16x1xf32>
    %46 = arith.subf %44, %45 : vector<16x1xf32>
    %cst_18 = arith.constant 0.000000e+00 : f32
    %47 = vector.broadcast %cst_18 : f32 to vector<16x1xf32>
    %48 = arith.maximumf %46, %47 : vector<16x1xf32>
    %49 = vector.broadcast %42 : vector<16x1xf32> to vector<16x128xf32>
    %50 = arith.subf %35, %49 : vector<16x128xf32>
    %cst_19 = arith.constant 9.99999974E-6 : f32
    %51 = vector.broadcast %cst_19 : f32 to vector<16x1xf32>
    %52 = arith.addf %48, %51 : vector<16x1xf32>
    %53 = math.rsqrt %52 : vector<16x1xf32>
    %54 = vector.broadcast %53 : vector<16x1xf32> to vector<16x128xf32>
    %55 = arith.mulf %50, %54 : vector<16x128xf32>
    %56 = arith.truncf %55 : vector<16x128xf32> to vector<16x128xbf16>
    %c0_20 = arith.constant 0 : index
    %c0_21 = arith.constant 0 : index
    %57 = vector.load %arg5[%c0_20, %c0_21] : memref<128x128xbf16, #tpu.memory_space<vmem>>, vector<128x128xbf16>
    %cst_22 = arith.constant dense<0.000000e+00> : vector<16x128xf32>
    %58 = tpu.matmul %56, %57, %cst_22 {dimension_numbers = #tpu.dot_dimension_numbers<[1], [0], [0], [1], [0, 0, 1, 1], [], []>} : vector<16x128xbf16>, vector<128x128xbf16>, vector<16x128xf32> -> vector<16x128xf32>
    %59 = vector.broadcast %3 : vector<1x128xf32> to vector<16x128xf32>
    %60 = arith.addf %58, %59 : vector<16x128xf32>
    %61 = arith.negf %60 : vector<16x128xf32>
    %62 = math.exp %61 : vector<16x128xf32>
    %cst_23 = arith.constant 1.000000e+00 : f32
    %63 = vector.broadcast %cst_23 : f32 to vector<16x128xf32>
    %64 = arith.addf %63, %62 : vector<16x128xf32>
    %65 = arith.divf %63, %64 : vector<16x128xf32>
    %66 = arith.mulf %60, %65 : vector<16x128xf32>
    %67 = arith.addf %35, %66 : vector<16x128xf32>
    %cst_24 = arith.constant dense<0.000000e+00> : vector<16xf32>
    %68 = vector.multi_reduction <add>, %67, %cst_24 [1] : vector<16x128xf32> to vector<16xf32>
    %69 = vector.shape_cast %68 : vector<16xf32> to vector<16x1xf32>
    %70 = arith.mulf %67, %67 : vector<16x128xf32>
    %cst_25 = arith.constant dense<0.000000e+00> : vector<16xf32>
    %71 = vector.multi_reduction <add>, %70, %cst_25 [1] : vector<16x128xf32> to vector<16xf32>
    %72 = vector.shape_cast %71 : vector<16xf32> to vector<16x1xf32>
    %cst_26 = arith.constant 3.125000e-02 : f32
    %73 = vector.broadcast %cst_26 : f32 to vector<16x1xf32>
    %74 = arith.mulf %69, %73 : vector<16x1xf32>
    %cst_27 = arith.constant 3.125000e-02 : f32
    %75 = vector.broadcast %cst_27 : f32 to vector<16x1xf32>
    %76 = arith.mulf %72, %75 : vector<16x1xf32>
    %77 = arith.mulf %74, %74 : vector<16x1xf32>
    %78 = arith.subf %76, %77 : vector<16x1xf32>
    %cst_28 = arith.constant 0.000000e+00 : f32
    %79 = vector.broadcast %cst_28 : f32 to vector<16x1xf32>
    %80 = arith.maximumf %78, %79 : vector<16x1xf32>
    %81 = vector.broadcast %74 : vector<16x1xf32> to vector<16x128xf32>
    %82 = arith.subf %67, %81 : vector<16x128xf32>
    %cst_29 = arith.constant 9.99999974E-6 : f32
    %83 = vector.broadcast %cst_29 : f32 to vector<16x1xf32>
    %84 = arith.addf %80, %83 : vector<16x1xf32>
    %85 = math.rsqrt %84 : vector<16x1xf32>
    %86 = vector.broadcast %85 : vector<16x1xf32> to vector<16x128xf32>
    %87 = arith.mulf %82, %86 : vector<16x128xf32>
    %88 = arith.truncf %87 : vector<16x128xf32> to vector<16x128xbf16>
    %c0_30 = arith.constant 0 : index
    %c0_31 = arith.constant 0 : index
    %89 = vector.load %arg6[%c0_30, %c0_31] : memref<128x128xbf16, #tpu.memory_space<vmem>>, vector<128x128xbf16>
    %cst_32 = arith.constant dense<0.000000e+00> : vector<16x128xf32>
    %90 = tpu.matmul %88, %89, %cst_32 {dimension_numbers = #tpu.dot_dimension_numbers<[1], [0], [0], [1], [0, 0, 1, 1], [], []>} : vector<16x128xbf16>, vector<128x128xbf16>, vector<16x128xf32> -> vector<16x128xf32>
    %91 = vector.broadcast %4 : vector<1x128xf32> to vector<16x128xf32>
    %92 = arith.addf %90, %91 : vector<16x128xf32>
    %93 = arith.negf %92 : vector<16x128xf32>
    %94 = math.exp %93 : vector<16x128xf32>
    %cst_33 = arith.constant 1.000000e+00 : f32
    %95 = vector.broadcast %cst_33 : f32 to vector<16x128xf32>
    %96 = arith.addf %95, %94 : vector<16x128xf32>
    %97 = arith.divf %95, %96 : vector<16x128xf32>
    %98 = arith.mulf %92, %97 : vector<16x128xf32>
    %99 = arith.addf %67, %98 : vector<16x128xf32>
    %cst_34 = arith.constant dense<0.000000e+00> : vector<16xf32>
    %100 = vector.multi_reduction <add>, %99, %cst_34 [1] : vector<16x128xf32> to vector<16xf32>
    %101 = vector.shape_cast %100 : vector<16xf32> to vector<16x1xf32>
    %102 = arith.mulf %99, %99 : vector<16x128xf32>
    %cst_35 = arith.constant dense<0.000000e+00> : vector<16xf32>
    %103 = vector.multi_reduction <add>, %102, %cst_35 [1] : vector<16x128xf32> to vector<16xf32>
    %104 = vector.shape_cast %103 : vector<16xf32> to vector<16x1xf32>
    %cst_36 = arith.constant 3.125000e-02 : f32
    %105 = vector.broadcast %cst_36 : f32 to vector<16x1xf32>
    %106 = arith.mulf %101, %105 : vector<16x1xf32>
    %cst_37 = arith.constant 3.125000e-02 : f32
    %107 = vector.broadcast %cst_37 : f32 to vector<16x1xf32>
    %108 = arith.mulf %104, %107 : vector<16x1xf32>
    %109 = arith.mulf %106, %106 : vector<16x1xf32>
    %110 = arith.subf %108, %109 : vector<16x1xf32>
    %cst_38 = arith.constant 0.000000e+00 : f32
    %111 = vector.broadcast %cst_38 : f32 to vector<16x1xf32>
    %112 = arith.maximumf %110, %111 : vector<16x1xf32>
    %113 = vector.broadcast %106 : vector<16x1xf32> to vector<16x128xf32>
    %114 = arith.subf %99, %113 : vector<16x128xf32>
    %cst_39 = arith.constant 9.99999974E-6 : f32
    %115 = vector.broadcast %cst_39 : f32 to vector<16x1xf32>
    %116 = arith.addf %112, %115 : vector<16x1xf32>
    %117 = math.rsqrt %116 : vector<16x1xf32>
    %118 = vector.broadcast %117 : vector<16x1xf32> to vector<16x128xf32>
    %119 = arith.mulf %114, %118 : vector<16x128xf32>
    %120 = arith.truncf %119 : vector<16x128xf32> to vector<16x128xbf16>
    %c0_40 = arith.constant 0 : index
    %c0_41 = arith.constant 0 : index
    %121 = vector.load %arg7[%c0_40, %c0_41] : memref<128x128xbf16, #tpu.memory_space<vmem>>, vector<128x128xbf16>
    %cst_42 = arith.constant dense<0.000000e+00> : vector<16x128xf32>
    %122 = tpu.matmul %120, %121, %cst_42 {dimension_numbers = #tpu.dot_dimension_numbers<[1], [0], [0], [1], [0, 0, 1, 1], [], []>} : vector<16x128xbf16>, vector<128x128xbf16>, vector<16x128xf32> -> vector<16x128xf32>
    %c0_43 = arith.constant 0 : index
    %c0_44 = arith.constant 0 : index
    %123 = vector.load %arg3[%c0_43, %c0_44] : memref<1x128xf32, #tpu.memory_space<vmem>>, vector<1x128xf32>
    %124 = vector.broadcast %123 : vector<1x128xf32> to vector<16x128xf32>
    %125 = arith.addf %122, %124 : vector<16x128xf32>
    %c0_45 = arith.constant 0 : index
    %c0_46 = arith.constant 0 : index
    %126 = vector.load %arg8[%c0_45, %c0_46] : memref<16x128xf32, #tpu.memory_space<vmem>>, vector<16x128xf32>
    tpu.vector_store %arg8[%c0_45, %c0_46], %125 {strides = array<i32>} : memref<16x128xf32, #tpu.memory_space<vmem>>, vector<16x128xf32>,
    return
  }
  func.func @transform_0(%arg0: i32) -> (i32, i32) {
    %c0_i32 = arith.constant 0 : i32
    %c0_i32_0 = arith.constant 0 : i32
    return %arg0, %c0_i32 : i32, i32
  }
  func.func @transform_1(%arg0: i32) -> (i32, i32) {
    %c0_i32 = arith.constant 0 : i32
    %c0_i32_0 = arith.constant 0 : i32
    %c0_i32_1 = arith.constant 0 : i32
    return %c0_i32, %c0_i32_0 : i32, i32
  }
  func.func @transform_2(%arg0: i32) -> (i32, i32) {
    %c0_i32 = arith.constant 0 : i32
    %c0_i32_0 = arith.constant 0 : i32
    %c0_i32_1 = arith.constant 0 : i32
    return %c0_i32, %c0_i32_0 : i32, i32
  }
  func.func @transform_3(%arg0: i32) -> (i32, i32) {
    %c0_i32 = arith.constant 0 : i32
    %c0_i32_0 = arith.constant 0 : i32
    %c0_i32_1 = arith.constant 0 : i32
    return %c0_i32, %c0_i32_0 : i32, i32
  }
  func.func @transform_4(%arg0: i32) -> (i32, i32) {
    %c0_i32 = arith.constant 0 : i32
    %c0_i32_0 = arith.constant 0 : i32
    %c0_i32_1 = arith.constant 0 : i32
    return %c0_i32, %c0_i32_0 : i32, i32
  }
  func.func @transform_5(%arg0: i32) -> (i32, i32) {
    %c0_i32 = arith.constant 0 : i32
    %c0_i32_0 = arith.constant 0 : i32
    %c0_i32_1 = arith.constant 0 : i32
    return %c0_i32, %c0_i32_0 : i32, i32
  }
  func.func @transform_6(%arg0: i32) -> (i32, i32) {
    %c0_i32 = arith.constant 0 : i32
    %c0_i32_0 = arith.constant 0 : i32
    %c0_i32_1 = arith.constant 0 : i32
    return %c0_i32, %c0_i32_0 : i32, i32
  }
  func.func @transform_7(%arg0: i32) -> (i32, i32) {
    %c0_i32 = arith.constant 0 : i32
    %c0_i32_0 = arith.constant 0 : i32
    return %arg0, %c0_i32 : i32, i32
  }
}

module attributes {stable_mosaic.version = 11 : i64} {
  func.func @noise_pred_kernel(%arg0: i32, %arg1: memref<16x128xbf16, #tpu.memory_space<vmem>>, %arg2: memref<3x128xf32, #tpu.memory_space<vmem>>, %arg3: memref<1x128xf32, #tpu.memory_space<vmem>>, %arg4: memref<128x128xbf16, #tpu.memory_space<vmem>>, %arg5: memref<128x128xbf16, #tpu.memory_space<vmem>>, %arg6: memref<128x128xbf16, #tpu.memory_space<vmem>>, %arg7: memref<128x128xbf16, #tpu.memory_space<vmem>>, %arg8: memref<16x128xf32, #tpu.memory_space<vmem>>) attributes {dimension_semantics = [#tpu.dimension_semantics<parallel>], iteration_bounds = array<i64: 1>, scalar_prefetch = 0 : i64, scratch_operands = 0 : i64, tpu.core_type = #tpu.core_type<tc>, window_params = [{transform_indices = @transform_0, window_bounds = array<i64: 16, 128>}, {pipeline_mode = #tpu.pipeline_mode<synchronous>, transform_indices = @transform_1, window_bounds = array<i64: 3, 128>}, {pipeline_mode = #tpu.pipeline_mode<synchronous>, transform_indices = @transform_2, window_bounds = array<i64: 1, 128>}, {pipeline_mode = #tpu.pipeline_mode<synchronous>, transform_indices = @transform_3, window_bounds = array<i64: 128, 128>}, {pipeline_mode = #tpu.pipeline_mode<synchronous>, transform_indices = @transform_4, window_bounds = array<i64: 128, 128>}, {pipeline_mode = #tpu.pipeline_mode<synchronous>, transform_indices = @transform_5, window_bounds = array<i64: 128, 128>}, {pipeline_mode = #tpu.pipeline_mode<synchronous>, transform_indices = @transform_6, window_bounds = array<i64: 128, 128>}, {transform_indices = @transform_7, window_bounds = array<i64: 16, 128>}]} {
    %c0 = arith.constant 0 : index
    %c0_0 = arith.constant 0 : index
    %0 = vector.load %arg1[%c0, %c0_0] : memref<16x128xbf16, #tpu.memory_space<vmem>>, vector<16x128xbf16>
    %1 = arith.extf %0 : vector<16x128xbf16> to vector<16x128xf32>
    %c0_1 = arith.constant 0 : index
    %c0_2 = arith.constant 0 : index
    %2 = vector.load %arg2[%c0_1, %c0_2] : memref<3x128xf32, #tpu.memory_space<vmem>>, vector<1x128xf32>
    %c1 = arith.constant 1 : index
    %c0_3 = arith.constant 0 : index
    %3 = vector.load %arg2[%c1, %c0_3] : memref<3x128xf32, #tpu.memory_space<vmem>>, vector<1x128xf32>
    %c2 = arith.constant 2 : index
    %c0_4 = arith.constant 0 : index
    %4 = vector.load %arg2[%c2, %c0_4] : memref<3x128xf32, #tpu.memory_space<vmem>>, vector<1x128xf32>
    %cst = arith.constant dense<0.000000e+00> : vector<16xf32>
    %5 = vector.multi_reduction <add>, %1, %cst [1] : vector<16x128xf32> to vector<16xf32>
    %6 = vector.shape_cast %5 : vector<16xf32> to vector<16x1xf32>
    %7 = arith.mulf %1, %1 : vector<16x128xf32>
    %cst_5 = arith.constant dense<0.000000e+00> : vector<16xf32>
    %8 = vector.multi_reduction <add>, %7, %cst_5 [1] : vector<16x128xf32> to vector<16xf32>
    %9 = vector.shape_cast %8 : vector<16xf32> to vector<16x1xf32>
    %cst_6 = arith.constant 3.125000e-02 : f32
    %10 = vector.broadcast %cst_6 : f32 to vector<16x1xf32>
    %11 = arith.mulf %6, %10 : vector<16x1xf32>
    %cst_7 = arith.constant 3.125000e-02 : f32
    %12 = vector.broadcast %cst_7 : f32 to vector<16x1xf32>
    %13 = arith.mulf %9, %12 : vector<16x1xf32>
    %14 = arith.mulf %11, %11 : vector<16x1xf32>
    %15 = arith.subf %13, %14 : vector<16x1xf32>
    %cst_8 = arith.constant 0.000000e+00 : f32
    %16 = vector.broadcast %cst_8 : f32 to vector<16x1xf32>
    %17 = arith.maximumf %15, %16 : vector<16x1xf32>
    %18 = vector.broadcast %11 : vector<16x1xf32> to vector<16x128xf32>
    %19 = arith.subf %1, %18 : vector<16x128xf32>
    %cst_9 = arith.constant 9.99999974E-6 : f32
    %20 = vector.broadcast %cst_9 : f32 to vector<16x1xf32>
    %21 = arith.addf %17, %20 : vector<16x1xf32>
    %22 = math.rsqrt %21 : vector<16x1xf32>
    %23 = vector.broadcast %22 : vector<16x1xf32> to vector<16x128xf32>
    %24 = arith.mulf %19, %23 : vector<16x128xf32>
    %25 = arith.truncf %24 : vector<16x128xf32> to vector<16x128xbf16>
    %c0_10 = arith.constant 0 : index
    %c0_11 = arith.constant 0 : index
    %26 = vector.load %arg4[%c0_10, %c0_11] : memref<128x128xbf16, #tpu.memory_space<vmem>>, vector<128x128xbf16>
    %cst_12 = arith.constant dense<0.000000e+00> : vector<16x128xf32>
    %27 = tpu.matmul %25, %26, %cst_12 {dimension_numbers = #tpu.dot_dimension_numbers<[1], [0], [0], [1], [0, 0, 1, 1], [], []>} : vector<16x128xbf16>, vector<128x128xbf16>, vector<16x128xf32> -> vector<16x128xf32>
    %28 = vector.broadcast %2 : vector<1x128xf32> to vector<16x128xf32>
    %29 = arith.addf %27, %28 : vector<16x128xf32>
    %30 = arith.negf %29 : vector<16x128xf32>
    %31 = math.exp %30 : vector<16x128xf32>
    %cst_13 = arith.constant 1.000000e+00 : f32
    %32 = vector.broadcast %cst_13 : f32 to vector<16x128xf32>
    %33 = arith.addf %32, %31 : vector<16x128xf32>
    %34 = arith.divf %32, %33 : vector<16x128xf32>
    %35 = arith.mulf %29, %34 : vector<16x128xf32>
    %cst_14 = arith.constant dense<0.000000e+00> : vector<16xf32>
    %36 = vector.multi_reduction <add>, %35, %cst_14 [1] : vector<16x128xf32> to vector<16xf32>
    %37 = vector.shape_cast %36 : vector<16xf32> to vector<16x1xf32>
    %38 = arith.mulf %35, %35 : vector<16x128xf32>
    %cst_15 = arith.constant dense<0.000000e+00> : vector<16xf32>
    %39 = vector.multi_reduction <add>, %38, %cst_15 [1] : vector<16x128xf32> to vector<16xf32>
    %40 = vector.shape_cast %39 : vector<16xf32> to vector<16x1xf32>
    %cst_16 = arith.constant 3.125000e-02 : f32
    %41 = vector.broadcast %cst_16 : f32 to vector<16x1xf32>
    %42 = arith.mulf %37, %41 : vector<16x1xf32>
    %cst_17 = arith.constant 3.125000e-02 : f32
    %43 = vector.broadcast %cst_17 : f32 to vector<16x1xf32>
    %44 = arith.mulf %40, %43 : vector<16x1xf32>
    %45 = arith.mulf %42, %42 : vector<16x1xf32>
    %46 = arith.subf %44, %45 : vector<16x1xf32>
    %cst_18 = arith.constant 0.000000e+00 : f32
    %47 = vector.broadcast %cst_18 : f32 to vector<16x1xf32>
    %48 = arith.maximumf %46, %47 : vector<16x1xf32>
    %49 = vector.broadcast %42 : vector<16x1xf32> to vector<16x128xf32>
    %50 = arith.subf %35, %49 : vector<16x128xf32>
    %cst_19 = arith.constant 9.99999974E-6 : f32
    %51 = vector.broadcast %cst_19 : f32 to vector<16x1xf32>
    %52 = arith.addf %48, %51 : vector<16x1xf32>
    %53 = math.rsqrt %52 : vector<16x1xf32>
    %54 = vector.broadcast %53 : vector<16x1xf32> to vector<16x128xf32>
    %55 = arith.mulf %50, %54 : vector<16x128xf32>
    %56 = arith.truncf %55 : vector<16x128xf32> to vector<16x128xbf16>
    %c0_20 = arith.constant 0 : index
    %c0_21 = arith.constant 0 : index
    %57 = vector.load %arg5[%c0_20, %c0_21] : memref<128x128xbf16, #tpu.memory_space<vmem>>, vector<128x128xbf16>
    %cst_22 = arith.constant dense<0.000000e+00> : vector<16x128xf32>
    %58 = tpu.matmul %56, %57, %cst_22 {dimension_numbers = #tpu.dot_dimension_numbers<[1], [0], [0], [1], [0, 0, 1, 1], [], []>} : vector<16x128xbf16>, vector<128x128xbf16>, vector<16x128xf32> -> vector<16x128xf32>
    %59 = vector.broadcast %3 : vector<1x128xf32> to vector<16x128xf32>
    %60 = arith.addf %58, %59 : vector<16x128xf32>
    %61 = arith.negf %60 : vector<16x128xf32>
    %62 = math.exp %61 : vector<16x128xf32>
    %cst_23 = arith.constant 1.000000e+00 : f32
    %63 = vector.broadcast %cst_23 : f32 to vector<16x128xf32>
    %64 = arith.addf %63, %62 : vector<16x128xf32>
    %65 = arith.divf %63, %64 : vector<16x128xf32>
    %66 = arith.mulf %60, %65 : vector<16x128xf32>
    %67 = arith.addf %35, %66 : vector<16x128xf32>
    %cst_24 = arith.constant dense<0.000000e+00> : vector<16xf32>
    %68 = vector.multi_reduction <add>, %67, %cst_24 [1] : vector<16x128xf32> to vector<16xf32>
    %69 = vector.shape_cast %68 : vector<16xf32> to vector<16x1xf32>
    %70 = arith.mulf %67, %67 : vector<16x128xf32>
    %cst_25 = arith.constant dense<0.000000e+00> : vector<16xf32>
    %71 = vector.multi_reduction <add>, %70, %cst_25 [1] : vector<16x128xf32> to vector<16xf32>
    %72 = vector.shape_cast %71 : vector<16xf32> to vector<16x1xf32>
    %cst_26 = arith.constant 3.125000e-02 : f32
    %73 = vector.broadcast %cst_26 : f32 to vector<16x1xf32>
    %74 = arith.mulf %69, %73 : vector<16x1xf32>
    %cst_27 = arith.constant 3.125000e-02 : f32
    %75 = vector.broadcast %cst_27 : f32 to vector<16x1xf32>
    %76 = arith.mulf %72, %75 : vector<16x1xf32>
    %77 = arith.mulf %74, %74 : vector<16x1xf32>
    %78 = arith.subf %76, %77 : vector<16x1xf32>
    %cst_28 = arith.constant 0.000000e+00 : f32
    %79 = vector.broadcast %cst_28 : f32 to vector<16x1xf32>
    %80 = arith.maximumf %78, %79 : vector<16x1xf32>
    %81 = vector.broadcast %74 : vector<16x1xf32> to vector<16x128xf32>
    %82 = arith.subf %67, %81 : vector<16x128xf32>
    %cst_29 = arith.constant 9.99999974E-6 : f32
    %83 = vector.broadcast %cst_29 : f32 to vector<16x1xf32>
    %84 = arith.addf %80, %83 : vector<16x1xf32>
    %85 = math.rsqrt %84 : vector<16x1xf32>
    %86 = vector.broadcast %85 : vector<16x1xf32> to vector<16x128xf32>
    %87 = arith.mulf %82, %86 : vector<16x128xf32>
    %88 = arith.truncf %87 : vector<16x128xf32> to vector<16x128xbf16>
    %c0_30 = arith.constant 0 : index
    %c0_31 = arith.constant 0 : index
    %89 = vector.load %arg6[%c0_30, %c0_31] : memref<128x128xbf16, #tpu.memory_space<vmem>>, vector<128x128xbf16>
    %cst_32 = arith.constant dense<0.000000e+00> : vector<16x128xf32>
    %90 = tpu.matmul %88, %89, %cst_32 {dimension_numbers = #tpu.dot_dimension_numbers<[1], [0], [0], [1], [0, 0, 1, 1], [], []>} : vector<16x128xbf16>, vector<128x128xbf16>, vector<16x128xf32> -> vector<16x128xf32>
    %91 = vector.broadcast %4 : vector<1x128xf32> to vector<16x128xf32>
    %92 = arith.addf %90, %91 : vector<16x128xf32>
    %93 = arith.negf %92 : vector<16x128xf32>
    %94 = math.exp %93 : vector<16x128xf32>
    %cst_33 = arith.constant 1.000000e+00 : f32
    %95 = vector.broadcast %cst_33 : f32 to vector<16x128xf32>
    %96 = arith.addf %95, %94 : vector<16x128xf32>
    %97 = arith.divf %95, %96 : vector<16x128xf32>
    %98 = arith.mulf %92, %97 : vector<16x128xf32>
    %99 = arith.addf %67, %98 : vector<16x128xf32>
    %cst_34 = arith.constant dense<0.000000e+00> : vector<16xf32>
    %100 = vector.multi_reduction <add>, %99, %cst_34 [1] : vector<16x128xf32> to vector<16xf32>
    %101 = vector.shape_cast %100 : vector<16xf32> to vector<16x1xf32>
    %102 = arith.mulf %99, %99 : vector<16x128xf32>
    %cst_35 = arith.constant dense<0.000000e+00> : vector<16xf32>
    %103 = vector.multi_reduction <add>, %102, %cst_35 [1] : vector<16x128xf32> to vector<16xf32>
    %104 = vector.shape_cast %103 : vector<16xf32> to vector<16x1xf32>
    %cst_36 = arith.constant 3.125000e-02 : f32
    %105 = vector.broadcast %cst_36 : f32 to vector<16x1xf32>
    %106 = arith.mulf %101, %105 : vector<16x1xf32>
    %cst_37 = arith.constant 3.125000e-02 : f32
    %107 = vector.broadcast %cst_37 : f32 to vector<16x1xf32>
    %108 = arith.mulf %104, %107 : vector<16x1xf32>
    %109 = arith.mulf %106, %106 : vector<16x1xf32>
    %110 = arith.subf %108, %109 : vector<16x1xf32>
    %cst_38 = arith.constant 0.000000e+00 : f32
    %111 = vector.broadcast %cst_38 : f32 to vector<16x1xf32>
    %112 = arith.maximumf %110, %111 : vector<16x1xf32>
    %113 = vector.broadcast %106 : vector<16x1xf32> to vector<16x128xf32>
    %114 = arith.subf %99, %113 : vector<16x128xf32>
    %cst_39 = arith.constant 9.99999974E-6 : f32
    %115 = vector.broadcast %cst_39 : f32 to vector<16x1xf32>
    %116 = arith.addf %112, %115 : vector<16x1xf32>
    %117 = math.rsqrt %116 : vector<16x1xf32>
    %118 = vector.broadcast %117 : vector<16x1xf32> to vector<16x128xf32>
    %119 = arith.mulf %114, %118 : vector<16x128xf32>
    %120 = arith.truncf %119 : vector<16x128xf32> to vector<16x128xbf16>
    %c0_40 = arith.constant 0 : index
    %c0_41 = arith.constant 0 : index
    %121 = vector.load %arg7[%c0_40, %c0_41] : memref<128x128xbf16, #tpu.memory_space<vmem>>, vector<128x128xbf16>
    %cst_42 = arith.constant dense<0.000000e+00> : vector<16x128xf32>
    %122 = tpu.matmul %120, %121, %cst_42 {dimension_numbers = #tpu.dot_dimension_numbers<[1], [0], [0], [1], [0, 0, 1, 1], [], []>} : vector<16x128xbf16>, vector<128x128xbf16>, vector<16x128xf32> -> vector<16x128xf32>
    %c0_43 = arith.constant 0 : index
    %c0_44 = arith.constant 0 : index
    %123 = vector.load %arg3[%c0_43, %c0_44] : memref<1x128xf32, #tpu.memory_space<vmem>>, vector<1x128xf32>
    %124 = vector.broadcast %123 : vector<1x128xf32> to vector<16x128xf32>
    %125 = arith.addf %122, %124 : vector<16x128xf32>
    %c0_45 = arith.constant 0 : index
    %c0_46 = arith.constant 0 : index
    %126 = vector.load %arg8[%c0_45, %c0_46] : memref<16x128xf32, #tpu.memory_space<vmem>>, vector<16x128xf32>
    tpu.vector_store %arg8[%c0_45, %c0_46], %125 {strides = array<i32>} : memref<16x128xf32, #tpu.memory_space<vmem>>, vector<16x128xf32>,
    return
  }
  func.func @transform_0(%arg0: i32) -> (i32, i32) {
    %c0_i32 = arith.constant 0 : i32
    %c0_i32_0 = arith.constant 0 : i32
    return %arg0, %c0_i32 : i32, i32
  }
  func.func @transform_1(%arg0: i32) -> (i32, i32) {
    %c0_i32 = arith.constant 0 : i32
    %c0_i32_0 = arith.constant 0 : i32
    %c0_i32_1 = arith.constant 0 : i32
    return %c0_i32, %c0_i32_0 : i32, i32
  }
  func.func @transform_2(%arg0: i32) -> (i32, i32) {
    %c0_i32 = arith.constant 0 : i32
    %c0_i32_0 = arith.constant 0 : i32
    %c0_i32_1 = arith.constant 0 : i32
    return %c0_i32, %c0_i32_0 : i32, i32
  }
  func.func @transform_3(%arg0: i32) -> (i32, i32) {
    %c0_i32 = arith.constant 0 : i32
    %c0_i32_0 = arith.constant 0 : i32
    %c0_i32_1 = arith.constant 0 : i32
    return %c0_i32, %c0_i32_0 : i32, i32
  }
  func.func @transform_4(%arg0: i32) -> (i32, i32) {
    %c0_i32 = arith.constant 0 : i32
    %c0_i32_0 = arith.constant 0 : i32
    %c0_i32_1 = arith.constant 0 : i32
    return %c0_i32, %c0_i32_0 : i32, i32
  }
  func.func @transform_5(%arg0: i32) -> (i32, i32) {
    %c0_i32 = arith.constant 0 : i32
    %c0_i32_0 = arith.constant 0 : i32
    %c0_i32_1 = arith.constant 0 : i32
    return %c0_i32, %c0_i32_0 : i32, i32
  }
  func.func @transform_6(%arg0: i32) -> (i32, i32) {
    %c0_i32 = arith.constant 0 : i32
    %c0_i32_0 = arith.constant 0 : i32
    %c0_i32_1 = arith.constant 0 : i32
    return %c0_i32, %c0_i32_0 : i32, i32
  }
  func.func @transform_7(%arg0: i32) -> (i32, i32) {
    %c0_i32 = arith.constant 0 : i32
    %c0_i32_0 = arith.constant 0 : i32
    return %arg0, %c0_i32 : i32, i32
  }
}

</mosaic_0001>

<llo_original>
// kernel: tpu_custom_call.1
$region0: #{tpu_custom_call.1}
  #allocation0 [shape = 'u32[]', space=smem, size = 0x4, offset = 0x4, fixed_abs, tag = 'smem constant byte address 0x4 - core index']
  #allocation1 [shape = 'u32[144,128]{1,0:T(1,128)}', space=vmem, size = 0x12000, scoped, tag = 'internal scratch']
  %s0 = inlined_call_operand.hbm [shape: bf16[16,128], index: 0, kind: input, shape index: {}]
  %s1 = inlined_call_operand.hbm [shape: f32[3,128], index: 1, kind: input, shape index: {}]
  %s2 = inlined_call_operand.vmem [shape: f32[1,128], index: 2, kind: input, shape index: {}]
  %s3 = inlined_call_operand.hbm [shape: bf16[128,128], index: 3, kind: input, shape index: {}]
  %s4 = inlined_call_operand.hbm [shape: bf16[128,128], index: 4, kind: input, shape index: {}]
  %s5 = inlined_call_operand.hbm [shape: bf16[128,128], index: 5, kind: input, shape index: {}]
  %s6 = inlined_call_operand.hbm [shape: bf16[128,128], index: 6, kind: input, shape index: {}]
  %s7 = inlined_call_operand.hbm [shape: f32[16,128], index: 7, kind: output, shape index: {}]
  %s8 = sld [smem:[#allocation0]]
  $region62: #{tpu_custom_call.1} parent=0
    _
  %s10 = ssub.s32 1, %s8
  %s11 = scalar_select 0, %s10, %s8
  $region1: #{tpu_custom_call.1} parent=0
    #allocation2 [shape = 'u8[4096]{0}', space=vmem, size = 0x1000, scoped, tag = 'input window, operand 0, single buffered']
    #allocation3 [shape = 's32[1]{0}', space=sflag, size = 0x4, scoped, tag = 'scoped memory for tpu_custom_call.1']
    #allocation4 [shape = 's32[1]{0}', space=sflag, size = 0x4, scoped, tag = 'scoped memory for tpu_custom_call.1']
    #allocation5 [shape = 'u8[2048]{0}', space=vmem, size = 0x800, scoped, tag = 'input window, operand 1, single buffered']
    #allocation6 [shape = 's32[1]{0}', space=sflag, size = 0x4, scoped, tag = 'scoped memory for tpu_custom_call.1']
    #allocation7 [shape = 'u8[32768]{0}', space=vmem, size = 0x8000, scoped, tag = 'input window, operand 3, single buffered']
    #allocation8 [shape = 'u8[32768]{0}', space=vmem, size = 0x8000, scoped, tag = 'input window, operand 4, single buffered']
    #allocation9 [shape = 's32[1]{0}', space=sflag, size = 0x4, scoped, tag = 'scoped memory for tpu_custom_call.1']
    #allocation10 [shape = 'u8[32768]{0}', space=vmem, size = 0x8000, scoped, tag = 'input window, operand 5, single buffered']
    #allocation11 [shape = 'u8[32768]{0}', space=vmem, size = 0x8000, scoped, tag = 'input window, operand 6, single buffered']
    #allocation12 [shape = 's32[1]{0}', space=sflag, size = 0x4, scoped, tag = 'scoped memory for tpu_custom_call.1']
    #allocation13 [shape = 'u8[8192]{0}', space=vmem, size = 0x2000, scoped, tag = 'output window, operand 0, single buffered']
    %12 = vsyncpa [#allocation3], 0
    %13 = vsyncpa [#allocation6], 0
    %14 = vsyncpa [#allocation9], 0
    %15 = vsyncpa [#allocation12], 0
    %16 = vsyncpa [#allocation4], 0
    // Predicated region
    $region2: #{tpu_custom_call.1} parent=1 // pred_check
      _
    $region3: #{tpu_custom_call.1} parent=1 // pred_check_branch
      %18 = sbr.rel (0) target = $region5
    $region4: #{tpu_custom_call.1} parent=1 // pred_region
      %s20 = ssub.s32 128, 128
      %21 = vsyncadd [#allocation3], %s20
      %s22 = sshll.u32 [#allocation2], 4
      %s23 = int_to_ptr.vmem [resolvable:$true] %s22
      %28 = dma.hbm_to_vmem [thread:$0]  %s0, 128, %s23, [#allocation3], 64, 64, 4
    $region5: #{tpu_custom_call.1} parent=1 // pred_fallthru
      _
    // Predicated region
    $region6: #{tpu_custom_call.1} parent=1 // pred_check
      _
    $region7: #{tpu_custom_call.1} parent=1 // pred_check_branch
      %30 = sbr.rel (0) target = $region9
    $region8: #{tpu_custom_call.1} parent=1 // pred_region
      %s32 = ssub.s32 64, 64
      %33 = vsyncadd [#allocation6], %s32
      %s35 = sshll.u32 [#allocation5], 4
      %s36 = int_to_ptr.vmem [resolvable:$true] %s35
      %38 = dma.hbm_to_vmem [thread:$0]  %s1, 64, %s36, [#allocation6]
    $region9: #{tpu_custom_call.1} parent=1 // pred_fallthru
      _
    // Predicated region
    $region10: #{tpu_custom_call.1} parent=1 // pred_check
      _
    $region11: #{tpu_custom_call.1} parent=1 // pred_check_branch
      %40 = sbr.rel (0) target = $region13
    $region12: #{tpu_custom_call.1} parent=1 // pred_region
      _
    $region13: #{tpu_custom_call.1} parent=1 // pred_fallthru
      _
    // Predicated region
    $region14: #{tpu_custom_call.1} parent=1 // pred_check
      _
    $region15: #{tpu_custom_call.1} parent=1 // pred_check_branch
      %42 = sbr.rel (0) target = $region17
    $region16: #{tpu_custom_call.1} parent=1 // pred_region
      %s44 = ssub.s32 1024, 1024
      %45 = vsyncadd [#allocation6], %s44
      %s46 = sshll.u32 [#allocation7], 4
      %s47 = int_to_ptr.vmem [resolvable:$true] %s46
      %52 = dma.hbm_to_vmem [thread:$0]  %s3, 1024, %s47, [#allocation6], 64, 64, 4
    $region17: #{tpu_custom_call.1} parent=1 // pred_fallthru
      _
    // Predicated region
    $region18: #{tpu_custom_call.1} parent=1 // pred_check
      _
    $region19: #{tpu_custom_call.1} parent=1 // pred_check_branch
      %54 = sbr.rel (0) target = $region21
    $region20: #{tpu_custom_call.1} parent=1 // pred_region
      %s56 = ssub.s32 1024, 1024
      %57 = vsyncadd [#allocation9], %s56
      %s58 = sshll.u32 [#allocation8], 4
      %s59 = int_to_ptr.vmem [resolvable:$true] %s58
      %64 = dma.hbm_to_vmem [thread:$0]  %s4, 1024, %s59, [#allocation9], 64, 64, 4
    $region21: #{tpu_custom_call.1} parent=1 // pred_fallthru
      _
    // Predicated region
    $region22: #{tpu_custom_call.1} parent=1 // pred_check
      _
    $region23: #{tpu_custom_call.1} parent=1 // pred_check_branch
      %66 = sbr.rel (0) target = $region25
    $region24: #{tpu_custom_call.1} parent=1 // pred_region
      %s68 = ssub.s32 1024, 1024
      %69 = vsyncadd [#allocation9], %s68
      %s70 = sshll.u32 [#allocation10], 4
      %s71 = int_to_ptr.vmem [resolvable:$true] %s70
      %76 = dma.hbm_to_vmem [thread:$0]  %s5, 1024, %s71, [#allocation9], 64, 64, 4
    $region25: #{tpu_custom_call.1} parent=1 // pred_fallthru
      _
    // Predicated region
    $region26: #{tpu_custom_call.1} parent=1 // pred_check
      _
    $region27: #{tpu_custom_call.1} parent=1 // pred_check_branch
      %78 = sbr.rel (0) target = $region29
    $region28: #{tpu_custom_call.1} parent=1 // pred_region
      %s80 = ssub.s32 1024, 1024
      %81 = vsyncadd [#allocation12], %s80
      %s82 = sshll.u32 [#allocation11], 4
      %s83 = int_to_ptr.vmem [resolvable:$true] %s82
      %88 = dma.hbm_to_vmem [thread:$0]  %s6, 1024, %s83, [#allocation12], 64, 64, 4
    $region29: #{tpu_custom_call.1} parent=1 // pred_fallthru
      _
    // Predicated region
    $region30: #{tpu_custom_call.1} parent=1 // pred_check
      _
    $region31: #{tpu_custom_call.1} parent=1 // pred_check_branch
      %90 = sbr.rel (0) target = $region33
    $region32: #{tpu_custom_call.1} parent=1 // pred_region
      %91 = dma.done [#allocation3], 128
    $region33: #{tpu_custom_call.1} parent=1 // pred_fallthru
      _
    // Predicated region
    $region34: #{tpu_custom_call.1} parent=1 // pred_check
      _
    $region35: #{tpu_custom_call.1} parent=1 // pred_check_branch
      %93 = sbr.rel (0) target = $region37
    $region36: #{tpu_custom_call.1} parent=1 // pred_region
      %94 = dma.done [#allocation6], 64
    $region37: #{tpu_custom_call.1} parent=1 // pred_fallthru
      _
    // Predicated region
    $region38: #{tpu_custom_call.1} parent=1 // pred_check
      _
    $region39: #{tpu_custom_call.1} parent=1 // pred_check_branch
      %96 = sbr.rel (0) target = $region41
    $region40: #{tpu_custom_call.1} parent=1 // pred_region
      %97 = dma.done [#allocation6], 1024
    $region41: #{tpu_custom_call.1} parent=1 // pred_fallthru
      _
    // Predicated region
    $region42: #{tpu_custom_call.1} parent=1 // pred_check
      _
    $region43: #{tpu_custom_call.1} parent=1 // pred_check_branch
      %99 = sbr.rel (0) target = $region45
    $region44: #{tpu_custom_call.1} parent=1 // pred_region
      %100 = dma.done [#allocation9], 1024
    $region45: #{tpu_custom_call.1} parent=1 // pred_fallthru
      _
    // Predicated region
    $region46: #{tpu_custom_call.1} parent=1 // pred_check
      _
    $region47: #{tpu_custom_call.1} parent=1 // pred_check_branch
      %102 = sbr.rel (0) target = $region49
    $region48: #{tpu_custom_call.1} parent=1 // pred_region
      %103 = dma.done [#allocation9], 1024
    $region49: #{tpu_custom_call.1} parent=1 // pred_fallthru
      _
    // Predicated region
    $region50: #{tpu_custom_call.1} parent=1 // pred_check
      _
    $region51: #{tpu_custom_call.1} parent=1 // pred_check_branch
      %105 = sbr.rel (0) target = $region53
    $region52: #{tpu_custom_call.1} parent=1 // pred_region
      %106 = dma.done [#allocation12], 1024
    $region53: #{tpu_custom_call.1} parent=1 // pred_fallthru
      _
    %v108 = vld [vmem:[#allocation2] sm:$0xf]
    %v109 = vld [vmem:[#allocation2 + $0x4] sm:$0xf]
    %v110 = vunpack.c.l.bf16 %v108
    %v111 = vunpack.c.l.bf16 %v109
    %v112 = vld [vmem:[#allocation5] sm:$0x1]
    %v113 = vld [vmem:[#allocation5 + $0x1] sm:$0x1]
    %v114 = vld [vmem:[#allocation5 + $0x2] sm:$0x1]
    %115 = vadd.xlane.f32.xlu0 %v110
    %v116 = vpop.xlane.xlu0 %115
    %117 = vadd.xlane.f32.xlu0 %v111
    %v118 = vpop.xlane.xlu0 %117
    %v119 = vmul.f32 %v110, %v110
    %v120 = vmul.f32 %v111, %v111
    %121 = vadd.xlane.f32.xlu0 %v119
    %v122 = vpop.xlane.xlu0 %121
    %123 = vadd.xlane.f32.xlu0 %v120
    %v124 = vpop.xlane.xlu0 %123
    %v125 = vmul.f32 %v116, 0.03125
    %v126 = vmul.f32 %v118, 0.03125
    %v127 = vmul.f32 %v122, 0.03125
    %v128 = vmul.f32 %v124, 0.03125
    %v129 = vmul.f32 %v125, %v125
    %v130 = vmul.f32 %v126, %v126
    %v131 = vsub.f32 %v127, %v129
    %v132 = vsub.f32 %v128, %v130
    %v133 = vmax.f32 %v131, 0.0
    %v134 = vmax.f32 %v132, 0.0
    %v135 = vsub.f32 %v110, %v125
    %v136 = vsub.f32 %v111, %v126
    %v137 = vadd.f32 %v133, 1e-05
    %v138 = vadd.f32 %v134, 1e-05
    %v139 = vrsqrt.pop %v137
    %v140 = vrsqrt.pop %v138
    %v141 = vmul.f32 %v135, %v139
    %v142 = vmul.f32 %v136, %v140
    %v143 = vpack.c.bf16 %v142, %v141
    %v144 = vld [vmem:[#allocation7] sm:$0xf]
    %v145 = vld [vmem:[#allocation7 + $0x4] sm:$0xf]
    %v146 = vld [vmem:[#allocation7 + $0x8] sm:$0xf]
    %v147 = vld [vmem:[#allocation7 + $0xc] sm:$0xf]
    %v148 = vld [vmem:[#allocation7 + $0x10] sm:$0xf]
    %v149 = vld [vmem:[#allocation7 + $0x14] sm:$0xf]
    %v150 = vld [vmem:[#allocation7 + $0x18] sm:$0xf]
    %v151 = vld [vmem:[#allocation7 + $0x1c] sm:$0xf]
    %v152 = vld [vmem:[#allocation7 + $0x20] sm:$0xf]
    %v153 = vld [vmem:[#allocation7 + $0x24] sm:$0xf]
    %v154 = vld [vmem:[#allocation7 + $0x28] sm:$0xf]
    %v155 = vld [vmem:[#allocation7 + $0x2c] sm:$0xf]
    %v156 = vld [vmem:[#allocation7 + $0x30] sm:$0xf]
    %v157 = vld [vmem:[#allocation7 + $0x34] sm:$0xf]
    %v158 = vld [vmem:[#allocation7 + $0x38] sm:$0xf]
    %v159 = vld [vmem:[#allocation7 + $0x3c] sm:$0xf]
    %v160 = vlaneseq
    %v161 = vshrl.u32 %v160, 7
    %v162 = vsub.s32 0, %v161
    %v163 = vrot.slane %v112, %v162
    %v180 = vunpack.c.l.b16 %v144
    %v181 = vunpack.c.l.b16 %v145
    %v182 = vunpack.c.l.b16 %v146
    %v183 = vunpack.c.l.b16 %v147
    %v184 = vunpack.c.l.b16 %v148
    %v185 = vunpack.c.l.b16 %v149
    %v186 = vunpack.c.l.b16 %v150
    %v187 = vunpack.c.l.b16 %v151
    %v188 = vunpack.c.l.b16 %v152
    %v189 = vunpack.c.l.b16 %v153
    %v190 = vunpack.c.l.b16 %v154
    %v191 = vunpack.c.l.b16 %v155
    %v192 = vunpack.c.l.b16 %v156
    %v193 = vunpack.c.l.b16 %v157
    %v194 = vunpack.c.l.b16 %v158
    %v195 = vunpack.c.l.b16 %v159
    %v196 = vpack.c.b16 %v181, %v180
    %v197 = vpack.c.b16 %v183, %v182
    %v198 = vpack.c.b16 %v185, %v184
    %v199 = vpack.c.b16 %v187, %v186
    %v200 = vpack.c.b16 %v189, %v188
    %v201 = vpack.c.b16 %v191, %v190
    %v202 = vpack.c.b16 %v193, %v192
    %v203 = vpack.c.b16 %v195, %v194
    %212 = vmatprep.subr.bf16.mxu0 0
    %213 = vmatpush1.bf16.msra.mxu0 %v196
    %214 = vmatprep.subr.bf16.mxu0 0
    %215 = vmatpush1.bf16.msra.mxu0 %v197
    %216 = vmatprep.subr.bf16.mxu0 0
    %217 = vmatpush1.bf16.msra.mxu0 %v198
    %218 = vmatprep.subr.bf16.mxu0 0
    %219 = vmatpush1.bf16.msra.mxu0 %v199
    %220 = vmatprep.subr.bf16.mxu0 0
    %221 = vmatpush1.bf16.msra.mxu0 %v200
    %222 = vmatprep.subr.bf16.mxu0 0
    %223 = vmatpush1.bf16.msra.mxu0 %v201
    %224 = vmatprep.subr.bf16.mxu0 0
    %225 = vmatpush1.bf16.msra.mxu0 %v202
    %226 = vmatprep.subr.bf16.mxu0 0
    %227 = vmatpush1.bf16.msra.mxu0 %v203
    %228 = vmatprep.subr.bf16.mxu0 0
    %229 = vmatpush1.bf16.msra.mxu0 0
    %230 = vmatprep.subr.bf16.mxu0 0
    %231 = vmatpush1.bf16.msra.mxu0 0
    %232 = vmatprep.subr.bf16.mxu0 0
    %233 = vmatpush1.bf16.msra.mxu0 0
    %234 = vmatprep.subr.bf16.mxu0 0
    %235 = vmatpush1.bf16.msra.mxu0 0
    %236 = vmatprep.subr.bf16.mxu0 0
    %237 = vmatpush1.bf16.msra.mxu0 0
    %238 = vmatprep.subr.bf16.mxu0 0
    %239 = vmatpush1.bf16.msra.mxu0 0
    %240 = vmatprep.subr.bf16.mxu0 0
    %241 = vmatpush1.bf16.msra.mxu0 0
    %242 = vmatprep.subr.bf16.mxu0 0
    %243 = vmatpush1.bf16.msra.mxu0 0
    %244 = vmatprep.mubr.bf16.mxu0 0
    %245 = vmatmul.mubr.bf16.gmra.mrb[0].mxu0 %v143
    %v246 = vpop.f32.mrb[0].mxu0
    %v247 = vadd.f32 %v163, %v246
    %v248 = vpop.f32.mrb[0].mxu0
    %v249 = vpop.f32.mrb[0].mxu0
    %v250 = vadd.f32 %v163, %v249
    %v251 = vpop.f32.mrb[0].mxu0
    %252 = vdwg.mxu0
    %v253 = vxor.u32 %v247, 2147483648
    %v254 = vxor.u32 %v250, 2147483648
    %v255 = vmul.f32 %v253, 1.442695
    %v256 = vpow.pop %v255
    %v257 = vmul.f32 %v254, 1.442695
    %v258 = vpow.pop %v257
    %v259 = vadd.f32 %v256, 1.0
    %v260 = vadd.f32 %v258, 1.0
    %v261 = vrcp.pop %v259
    %v262 = vmul.f32 1.0, %v261
    %v263 = vrcp.pop %v260
    %v264 = vmul.f32 1.0, %v263
    %v265 = vmul.f32 %v247, %v262
    %v266 = vmul.f32 %v250, %v264
    %267 = vadd.xlane.f32.xlu0 %v265
    %v268 = vpop.xlane.xlu0 %267
    %269 = vadd.xlane.f32.xlu0 %v266
    %v270 = vpop.xlane.xlu0 %269
    %v271 = vmul.f32 %v265, %v265
    %v272 = vmul.f32 %v266, %v266
    %273 = vadd.xlane.f32.xlu0 %v271
    %v274 = vpop.xlane.xlu0 %273
    %275 = vadd.xlane.f32.xlu0 %v272
    %v276 = vpop.xlane.xlu0 %275
    %v277 = vmul.f32 %v268, 0.03125
    %v278 = vmul.f32 %v270, 0.03125
    %v279 = vmul.f32 %v274, 0.03125
    %v280 = vmul.f32 %v276, 0.03125
    %v281 = vmul.f32 %v277, %v277
    %v282 = vmul.f32 %v278, %v278
    %v283 = vsub.f32 %v279, %v281
    %v284 = vsub.f32 %v280, %v282
    %v285 = vmax.f32 %v283, 0.0
    %v286 = vmax.f32 %v284, 0.0
    %v287 = vsub.f32 %v265, %v277
    %v288 = vsub.f32 %v266, %v278
    %v289 = vadd.f32 %v285, 1e-05
    %v290 = vadd.f32 %v286, 1e-05
    %v291 = vrsqrt.pop %v289
    %v292 = vrsqrt.pop %v290
    %v293 = vmul.f32 %v287, %v291
    %v294 = vmul.f32 %v288, %v292
    %v295 = vpack.c.bf16 %v294, %v293
    %v296 = vld [vmem:[#allocation8] sm:$0xf]
    %v297 = vld [vmem:[#allocation8 + $0x4] sm:$0xf]
    %v298 = vld [vmem:[#allocation8 + $0x8] sm:$0xf]
    %v299 = vld [vmem:[#allocation8 + $0xc] sm:$0xf]
    %v300 = vld [vmem:[#allocation8 + $0x10] sm:$0xf]
    %v301 = vld [vmem:[#allocation8 + $0x14] sm:$0xf]
    %v302 = vld [vmem:[#allocation8 + $0x18] sm:$0xf]
    %v303 = vld [vmem:[#allocation8 + $0x1c] sm:$0xf]
    %v304 = vld [vmem:[#allocation8 + $0x20] sm:$0xf]
    %v305 = vld [vmem:[#allocation8 + $0x24] sm:$0xf]
    %v306 = vld [vmem:[#allocation8 + $0x28] sm:$0xf]
    %v307 = vld [vmem:[#allocation8 + $0x2c] sm:$0xf]
    %v308 = vld [vmem:[#allocation8 + $0x30] sm:$0xf]
    %v309 = vld [vmem:[#allocation8 + $0x34] sm:$0xf]
    %v310 = vld [vmem:[#allocation8 + $0x38] sm:$0xf]
    %v311 = vld [vmem:[#allocation8 + $0x3c] sm:$0xf]
    %v312 = vlaneseq
    %v313 = vshrl.u32 %v312, 7
    %v314 = vsub.s32 0, %v313
    %v315 = vrot.slane %v113, %v314
    %v332 = vunpack.c.l.b16 %v296
    %v333 = vunpack.c.l.b16 %v297
    %v334 = vunpack.c.l.b16 %v298
    %v335 = vunpack.c.l.b16 %v299
    %v336 = vunpack.c.l.b16 %v300
    %v337 = vunpack.c.l.b16 %v301
    %v338 = vunpack.c.l.b16 %v302
    %v339 = vunpack.c.l.b16 %v303
    %v340 = vunpack.c.l.b16 %v304
    %v341 = vunpack.c.l.b16 %v305
    %v342 = vunpack.c.l.b16 %v306
    %v343 = vunpack.c.l.b16 %v307
    %v344 = vunpack.c.l.b16 %v308
    %v345 = vunpack.c.l.b16 %v309
    %v346 = vunpack.c.l.b16 %v310
    %v347 = vunpack.c.l.b16 %v311
    %v348 = vpack.c.b16 %v333, %v332
    %v349 = vpack.c.b16 %v335, %v334
    %v350 = vpack.c.b16 %v337, %v336
    %v351 = vpack.c.b16 %v339, %v338
    %v352 = vpack.c.b16 %v341, %v340
    %v353 = vpack.c.b16 %v343, %v342
    %v354 = vpack.c.b16 %v345, %v344
    %v355 = vpack.c.b16 %v347, %v346
    %364 = vmatprep.subr.bf16.mxu0 0
    %365 = vmatpush1.bf16.msra.mxu0 %v348
    %366 = vmatprep.subr.bf16.mxu0 0
    %367 = vmatpush1.bf16.msra.mxu0 %v349
    %368 = vmatprep.subr.bf16.mxu0 0
    %369 = vmatpush1.bf16.msra.mxu0 %v350
    %370 = vmatprep.subr.bf16.mxu0 0
    %371 = vmatpush1.bf16.msra.mxu0 %v351
    %372 = vmatprep.subr.bf16.mxu0 0
    %373 = vmatpush1.bf16.msra.mxu0 %v352
    %374 = vmatprep.subr.bf16.mxu0 0
    %375 = vmatpush1.bf16.msra.mxu0 %v353
    %376 = vmatprep.subr.bf16.mxu0 0
    %377 = vmatpush1.bf16.msra.mxu0 %v354
    %378 = vmatprep.subr.bf16.mxu0 0
    %379 = vmatpush1.bf16.msra.mxu0 %v355
    %380 = vmatprep.subr.bf16.mxu0 0
    %381 = vmatpush1.bf16.msra.mxu0 0
    %382 = vmatprep.subr.bf16.mxu0 0
    %383 = vmatpush1.bf16.msra.mxu0 0
    %384 = vmatprep.subr.bf16.mxu0 0
    %385 = vmatpush1.bf16.msra.mxu0 0
    %386 = vmatprep.subr.bf16.mxu0 0
    %387 = vmatpush1.bf16.msra.mxu0 0
    %388 = vmatprep.subr.bf16.mxu0 0
    %389 = vmatpush1.bf16.msra.mxu0 0
    %390 = vmatprep.subr.bf16.mxu0 0
    %391 = vmatpush1.bf16.msra.mxu0 0
    %392 = vmatprep.subr.bf16.mxu0 0
    %393 = vmatpush1.bf16.msra.mxu0 0
    %394 = vmatprep.subr.bf16.mxu0 0
    %395 = vmatpush1.bf16.msra.mxu0 0
    %396 = vmatprep.mubr.bf16.mxu0 0
    %397 = vmatmul.mubr.bf16.gmra.mrb[0].mxu0 %v295
    %v398 = vpop.f32.mrb[0].mxu0
    %v399 = vadd.f32 %v315, %v398
    %v400 = vpop.f32.mrb[0].mxu0
    %v401 = vpop.f32.mrb[0].mxu0
    %v402 = vadd.f32 %v315, %v401
    %v403 = vpop.f32.mrb[0].mxu0
    %404 = vdwg.mxu0
    %v405 = vxor.u32 %v399, 2147483648
    %v406 = vxor.u32 %v402, 2147483648
    %v407 = vmul.f32 %v405, 1.442695
    %v408 = vpow.pop %v407
    %v409 = vmul.f32 %v406, 1.442695
    %v410 = vpow.pop %v409
    %v411 = vadd.f32 %v408, 1.0
    %v412 = vadd.f32 %v410, 1.0
    %v413 = vrcp.pop %v411
    %v414 = vmul.f32 1.0, %v413
    %v415 = vrcp.pop %v412
    %v416 = vmul.f32 1.0, %v415
    %v417 = vmul.f32 %v399, %v414
    %v418 = vmul.f32 %v402, %v416
    %v419 = vadd.f32 %v265, %v417
    %v420 = vadd.f32 %v266, %v418
    %421 = vadd.xlane.f32.xlu0 %v419
    %v422 = vpop.xlane.xlu0 %421
    %423 = vadd.xlane.f32.xlu0 %v420
    %v424 = vpop.xlane.xlu0 %423
    %v425 = vmul.f32 %v419, %v419
    %v426 = vmul.f32 %v420, %v420
    %427 = vadd.xlane.f32.xlu0 %v425
    %v428 = vpop.xlane.xlu0 %427
    %429 = vadd.xlane.f32.xlu0 %v426
    %v430 = vpop.xlane.xlu0 %429
    %v431 = vmul.f32 %v422, 0.03125
    %v432 = vmul.f32 %v424, 0.03125
    %v433 = vmul.f32 %v428, 0.03125
    %v434 = vmul.f32 %v430, 0.03125
    %v435 = vmul.f32 %v431, %v431
    %v436 = vmul.f32 %v432, %v432
    %v437 = vsub.f32 %v433, %v435
    %v438 = vsub.f32 %v434, %v436
    %v439 = vmax.f32 %v437, 0.0
    %v440 = vmax.f32 %v438, 0.0
    %v441 = vsub.f32 %v419, %v431
    %v442 = vsub.f32 %v420, %v432
    %v443 = vadd.f32 %v439, 1e-05
    %v444 = vadd.f32 %v440, 1e-05
    %v445 = vrsqrt.pop %v443
    %v446 = vrsqrt.pop %v444
    %v447 = vmul.f32 %v441, %v445
    %v448 = vmul.f32 %v442, %v446
    %v449 = vpack.c.bf16 %v448, %v447
    %v450 = vld [vmem:[#allocation10] sm:$0xf]
    %v451 = vld [vmem:[#allocation10 + $0x4] sm:$0xf]
    %v452 = vld [vmem:[#allocation10 + $0x8] sm:$0xf]
    %v453 = vld [vmem:[#allocation10 + $0xc] sm:$0xf]
    %v454 = vld [vmem:[#allocation10 + $0x10] sm:$0xf]
    %v455 = vld [vmem:[#allocation10 + $0x14] sm:$0xf]
    %v456 = vld [vmem:[#allocation10 + $0x18] sm:$0xf]
    %v457 = vld [vmem:[#allocation10 + $0x1c] sm:$0xf]
    %v458 = vld [vmem:[#allocation10 + $0x20] sm:$0xf]
    %v459 = vld [vmem:[#allocation10 + $0x24] sm:$0xf]
    %v460 = vld [vmem:[#allocation10 + $0x28] sm:$0xf]
    %v461 = vld [vmem:[#allocation10 + $0x2c] sm:$0xf]
    %v462 = vld [vmem:[#allocation10 + $0x30] sm:$0xf]
    %v463 = vld [vmem:[#allocation10 + $0x34] sm:$0xf]
    %v464 = vld [vmem:[#allocation10 + $0x38] sm:$0xf]
    %v465 = vld [vmem:[#allocation10 + $0x3c] sm:$0xf]
    %v466 = vlaneseq
    %v467 = vshrl.u32 %v466, 7
    %v468 = vsub.s32 0, %v467
    %v469 = vrot.slane %v114, %v468
    %v486 = vunpack.c.l.b16 %v450
    %v487 = vunpack.c.l.b16 %v451
    %v488 = vunpack.c.l.b16 %v452
    %v489 = vunpack.c.l.b16 %v453
    %v490 = vunpack.c.l.b16 %v454
    %v491 = vunpack.c.l.b16 %v455
    %v492 = vunpack.c.l.b16 %v456
    %v493 = vunpack.c.l.b16 %v457
    %v494 = vunpack.c.l.b16 %v458
    %v495 = vunpack.c.l.b16 %v459
    %v496 = vunpack.c.l.b16 %v460
    %v497 = vunpack.c.l.b16 %v461
    %v498 = vunpack.c.l.b16 %v462
    %v499 = vunpack.c.l.b16 %v463
    %v500 = vunpack.c.l.b16 %v464
    %v501 = vunpack.c.l.b16 %v465
    %v502 = vpack.c.b16 %v487, %v486
    %v503 = vpack.c.b16 %v489, %v488
    %v504 = vpack.c.b16 %v491, %v490
    %v505 = vpack.c.b16 %v493, %v492
    %v506 = vpack.c.b16 %v495, %v494
    %v507 = vpack.c.b16 %v497, %v496
    %v508 = vpack.c.b16 %v499, %v498
    %v509 = vpack.c.b16 %v501, %v500
    %518 = vmatprep.subr.bf16.mxu0 0
    %519 = vmatpush1.bf16.msra.mxu0 %v502
    %520 = vmatprep.subr.bf16.mxu0 0
    %521 = vmatpush1.bf16.msra.mxu0 %v503
    %522 = vmatprep.subr.bf16.mxu0 0
    %523 = vmatpush1.bf16.msra.mxu0 %v504
    %524 = vmatprep.subr.bf16.mxu0 0
    %525 = vmatpush1.bf16.msra.mxu0 %v505
    %526 = vmatprep.subr.bf16.mxu0 0
    %527 = vmatpush1.bf16.msra.mxu0 %v506
    %528 = vmatprep.subr.bf16.mxu0 0
    %529 = vmatpush1.bf16.msra.mxu0 %v507
    %530 = vmatprep.subr.bf16.mxu0 0
    %531 = vmatpush1.bf16.msra.mxu0 %v508
    %532 = vmatprep.subr.bf16.mxu0 0
    %533 = vmatpush1.bf16.msra.mxu0 %v509
    %534 = vmatprep.subr.bf16.mxu0 0
    %535 = vmatpush1.bf16.msra.mxu0 0
    %536 = vmatprep.subr.bf16.mxu0 0
    %537 = vmatpush1.bf16.msra.mxu0 0
    %538 = vmatprep.subr.bf16.mxu0 0
    %539 = vmatpush1.bf16.msra.mxu0 0
    %540 = vmatprep.subr.bf16.mxu0 0
    %541 = vmatpush1.bf16.msra.mxu0 0
    %542 = vmatprep.subr.bf16.mxu0 0
    %543 = vmatpush1.bf16.msra.mxu0 0
    %544 = vmatprep.subr.bf16.mxu0 0
    %545 = vmatpush1.bf16.msra.mxu0 0
    %546 = vmatprep.subr.bf16.mxu0 0
    %547 = vmatpush1.bf16.msra.mxu0 0
    %548 = vmatprep.subr.bf16.mxu0 0
    %549 = vmatpush1.bf16.msra.mxu0 0
    %550 = vmatprep.mubr.bf16.mxu0 0
    %551 = vmatmul.mubr.bf16.gmra.mrb[0].mxu0 %v449
    %v552 = vpop.f32.mrb[0].mxu0
    %v553 = vadd.f32 %v469, %v552
    %v554 = vpop.f32.mrb[0].mxu0
    %v555 = vpop.f32.mrb[0].mxu0
    %v556 = vadd.f32 %v469, %v555
    %v557 = vpop.f32.mrb[0].mxu0
    %558 = vdwg.mxu0
    %v559 = vxor.u32 %v553, 2147483648
    %v560 = vxor.u32 %v556, 2147483648
    %v561 = vmul.f32 %v559, 1.442695
    %v562 = vpow.pop %v561
    %v563 = vmul.f32 %v560, 1.442695
    %v564 = vpow.pop %v563
    %v565 = vadd.f32 %v562, 1.0
    %v566 = vadd.f32 %v564, 1.0
    %v567 = vrcp.pop %v565
    %v568 = vmul.f32 1.0, %v567
    %v569 = vrcp.pop %v566
    %v570 = vmul.f32 1.0, %v569
    %v571 = vmul.f32 %v553, %v568
    %v572 = vmul.f32 %v556, %v570
    %v573 = vadd.f32 %v419, %v571
    %v574 = vadd.f32 %v420, %v572
    %575 = vadd.xlane.f32.xlu0 %v573
    %v576 = vpop.xlane.xlu0 %575
    %577 = vadd.xlane.f32.xlu0 %v574
    %v578 = vpop.xlane.xlu0 %577
    %v579 = vmul.f32 %v573, %v573
    %v580 = vmul.f32 %v574, %v574
    %581 = vadd.xlane.f32.xlu0 %v579
    %v582 = vpop.xlane.xlu0 %581
    %583 = vadd.xlane.f32.xlu0 %v580
    %v584 = vpop.xlane.xlu0 %583
    %v585 = vmul.f32 %v576, 0.03125
    %v586 = vmul.f32 %v578, 0.03125
    %v587 = vmul.f32 %v582, 0.03125
    %v588 = vmul.f32 %v584, 0.03125
    %v589 = vmul.f32 %v585, %v585
    %v590 = vmul.f32 %v586, %v586
    %v591 = vsub.f32 %v587, %v589
    %v592 = vsub.f32 %v588, %v590
    %v593 = vmax.f32 %v591, 0.0
    %v594 = vmax.f32 %v592, 0.0
    %v595 = vsub.f32 %v573, %v585
    %v596 = vsub.f32 %v574, %v586
    %v597 = vadd.f32 %v593, 1e-05
    %v598 = vadd.f32 %v594, 1e-05
    %v599 = vrsqrt.pop %v597
    %v600 = vrsqrt.pop %v598
    %v601 = vmul.f32 %v595, %v599
    %v602 = vmul.f32 %v596, %v600
    %v603 = vpack.c.bf16 %v602, %v601
    %v604 = vld [vmem:[#allocation11] sm:$0xf]
    %v605 = vld [vmem:[#allocation11 + $0x4] sm:$0xf]
    %v606 = vld [vmem:[#allocation11 + $0x8] sm:$0xf]
    %v607 = vld [vmem:[#allocation11 + $0xc] sm:$0xf]
    %v608 = vld [vmem:[#allocation11 + $0x10] sm:$0xf]
    %v609 = vld [vmem:[#allocation11 + $0x14] sm:$0xf]
    %v610 = vld [vmem:[#allocation11 + $0x18] sm:$0xf]
    %v611 = vld [vmem:[#allocation11 + $0x1c] sm:$0xf]
    %v612 = vld [vmem:[#allocation11 + $0x20] sm:$0xf]
    %v613 = vld [vmem:[#allocation11 + $0x24] sm:$0xf]
    %v614 = vld [vmem:[#allocation11 + $0x28] sm:$0xf]
    %v615 = vld [vmem:[#allocation11 + $0x2c] sm:$0xf]
    %v616 = vld [vmem:[#allocation11 + $0x30] sm:$0xf]
    %v617 = vld [vmem:[#allocation11 + $0x34] sm:$0xf]
    %v618 = vld [vmem:[#allocation11 + $0x38] sm:$0xf]
    %v619 = vld [vmem:[#allocation11 + $0x3c] sm:$0xf]
    %v620 = vld [vmem:[%s2] sm:$0x1]
    %v622 = vlaneseq
    %v623 = vshrl.u32 %v622, 7
    %v624 = vsub.s32 0, %v623
    %v625 = vrot.slane %v620, %v624
    %v643 = vunpack.c.l.b16 %v604
    %v644 = vunpack.c.l.b16 %v605
    %v645 = vunpack.c.l.b16 %v606
    %v646 = vunpack.c.l.b16 %v607
    %v647 = vunpack.c.l.b16 %v608
    %v648 = vunpack.c.l.b16 %v609
    %v649 = vunpack.c.l.b16 %v610
    %v650 = vunpack.c.l.b16 %v611
    %v651 = vunpack.c.l.b16 %v612
    %v652 = vunpack.c.l.b16 %v613
    %v653 = vunpack.c.l.b16 %v614
    %v654 = vunpack.c.l.b16 %v615
    %v655 = vunpack.c.l.b16 %v616
    %v656 = vunpack.c.l.b16 %v617
    %v657 = vunpack.c.l.b16 %v618
    %v658 = vunpack.c.l.b16 %v619
    %v659 = vpack.c.b16 %v644, %v643
    %v660 = vpack.c.b16 %v646, %v645
    %v661 = vpack.c.b16 %v648, %v647
    %v662 = vpack.c.b16 %v650, %v649
    %v663 = vpack.c.b16 %v652, %v651
    %v664 = vpack.c.b16 %v654, %v653
    %v665 = vpack.c.b16 %v656, %v655
    %v666 = vpack.c.b16 %v658, %v657
    %675 = vmatprep.subr.bf16.mxu0 0
    %676 = vmatpush1.bf16.msra.mxu0 %v659
    %677 = vmatprep.subr.bf16.mxu0 0
    %678 = vmatpush1.bf16.msra.mxu0 %v660
    %679 = vmatprep.subr.bf16.mxu0 0
    %680 = vmatpush1.bf16.msra.mxu0 %v661
    %681 = vmatprep.subr.bf16.mxu0 0
    %682 = vmatpush1.bf16.msra.mxu0 %v662
    %683 = vmatprep.subr.bf16.mxu0 0
    %684 = vmatpush1.bf16.msra.mxu0 %v663
    %685 = vmatprep.subr.bf16.mxu0 0
    %686 = vmatpush1.bf16.msra.mxu0 %v664
    %687 = vmatprep.subr.bf16.mxu0 0
    %688 = vmatpush1.bf16.msra.mxu0 %v665
    %689 = vmatprep.subr.bf16.mxu0 0
    %690 = vmatpush1.bf16.msra.mxu0 %v666
    %691 = vmatprep.subr.bf16.mxu0 0
    %692 = vmatpush1.bf16.msra.mxu0 0
    %693 = vmatprep.subr.bf16.mxu0 0
    %694 = vmatpush1.bf16.msra.mxu0 0
    %695 = vmatprep.subr.bf16.mxu0 0
    %696 = vmatpush1.bf16.msra.mxu0 0
    %697 = vmatprep.subr.bf16.mxu0 0
    %698 = vmatpush1.bf16.msra.mxu0 0
    %699 = vmatprep.subr.bf16.mxu0 0
    %700 = vmatpush1.bf16.msra.mxu0 0
    %701 = vmatprep.subr.bf16.mxu0 0
    %702 = vmatpush1.bf16.msra.mxu0 0
    %703 = vmatprep.subr.bf16.mxu0 0
    %704 = vmatpush1.bf16.msra.mxu0 0
    %705 = vmatprep.subr.bf16.mxu0 0
    %706 = vmatpush1.bf16.msra.mxu0 0
    %707 = vmatprep.mubr.bf16.mxu0 0
    %708 = vmatmul.mubr.bf16.gmra.mrb[0].mxu0 %v603
    %v709 = vpop.f32.mrb[0].mxu0
    %v710 = vadd.f32 %v625, %v709
    %v711 = vpop.f32.mrb[0].mxu0
    %v712 = vpop.f32.mrb[0].mxu0
    %v713 = vadd.f32 %v625, %v712
    %v714 = vpop.f32.mrb[0].mxu0
    %715 = vdwg.mxu0
    %716 = vst [vmem:[#allocation13] sm:$0xff] %v710
    %717 = vst [vmem:[#allocation13 + $0x8] sm:$0xff] %v713
    // Predicated region
    $region54: #{tpu_custom_call.1} parent=1 // pred_check
      _
    $region55: #{tpu_custom_call.1} parent=1 // pred_check_branch
      %719 = sbr.rel (0) target = $region57
    $region56: #{tpu_custom_call.1} parent=1 // pred_region
      %s721 = ssub.s32 256, 256
      %722 = vsyncadd [#allocation4], %s721
      %s723 = sshll.u32 [#allocation13], 4
      %s724 = int_to_ptr.vmem [resolvable:$true] %s723
      %729 = dma.vmem_to_hbm [thread:$0]  %s724, 256, %s7, [#allocation4], 128, 128, 8
    $region57: #{tpu_custom_call.1} parent=1 // pred_fallthru
      _
    // Predicated region
    $region58: #{tpu_custom_call.1} parent=1 // pred_check
      _
    $region59: #{tpu_custom_call.1} parent=1 // pred_check_branch
      %731 = sbr.rel (0) target = $region61
    $region60: #{tpu_custom_call.1} parent=1 // pred_region
      %732 = dma.done [#allocation4], 256
    $region61: #{tpu_custom_call.1} parent=1 // pred_fallthru
      _
    %733 = vsyncpa [#allocation3], 1
    %734 = vsyncpa [#allocation6], 1
    %735 = vsyncpa [#allocation9], 1
    %736 = vsyncpa [#allocation12], 1
    %737 = vsyncpa [#allocation4], 1

// kernel: tpu_custom_call.1
$region0: #{tpu_custom_call.1}
  #allocation0 [shape = 'u32[]', space=smem, size = 0x4, offset = 0x4, fixed_abs, tag = 'smem constant byte address 0x4 - core index']
  #allocation1 [shape = 'u32[144,128]{1,0:T(1,128)}', space=vmem, size = 0x12000, scoped, tag = 'internal scratch']
  %s0 = inlined_call_operand.hbm [shape: bf16[16,128], index: 0, kind: input, shape index: {}]
  %s1 = inlined_call_operand.hbm [shape: f32[3,128], index: 1, kind: input, shape index: {}]
  %s2 = inlined_call_operand.vmem [shape: f32[1,128], index: 2, kind: input, shape index: {}]
  %s3 = inlined_call_operand.hbm [shape: bf16[128,128], index: 3, kind: input, shape index: {}]
  %s4 = inlined_call_operand.hbm [shape: bf16[128,128], index: 4, kind: input, shape index: {}]
  %s5 = inlined_call_operand.hbm [shape: bf16[128,128], index: 5, kind: input, shape index: {}]
  %s6 = inlined_call_operand.hbm [shape: bf16[128,128], index: 6, kind: input, shape index: {}]
  %s7 = inlined_call_operand.hbm [shape: f32[16,128], index: 7, kind: output, shape index: {}]
  %s8 = sld [smem:[#allocation0]]
  $region62: #{tpu_custom_call.1} parent=0
    _
  %s10 = ssub.s32 1, %s8
  %s11 = scalar_select 0, %s10, %s8
  $region1: #{tpu_custom_call.1} parent=0
    #allocation2 [shape = 'u8[4096]{0}', space=vmem, size = 0x1000, scoped, tag = 'input window, operand 0, single buffered']
    #allocation3 [shape = 's32[1]{0}', space=sflag, size = 0x4, scoped, tag = 'scoped memory for tpu_custom_call.1']
    #allocation4 [shape = 's32[1]{0}', space=sflag, size = 0x4, scoped, tag = 'scoped memory for tpu_custom_call.1']
    #allocation5 [shape = 'u8[2048]{0}', space=vmem, size = 0x800, scoped, tag = 'input window, operand 1, single buffered']
    #allocation6 [shape = 's32[1]{0}', space=sflag, size = 0x4, scoped, tag = 'scoped memory for tpu_custom_call.1']
    #allocation7 [shape = 'u8[32768]{0}', space=vmem, size = 0x8000, scoped, tag = 'input window, operand 3, single buffered']
    #allocation8 [shape = 'u8[32768]{0}', space=vmem, size = 0x8000, scoped, tag = 'input window, operand 4, single buffered']
    #allocation9 [shape = 's32[1]{0}', space=sflag, size = 0x4, scoped, tag = 'scoped memory for tpu_custom_call.1']
    #allocation10 [shape = 'u8[32768]{0}', space=vmem, size = 0x8000, scoped, tag = 'input window, operand 5, single buffered']
    #allocation11 [shape = 'u8[32768]{0}', space=vmem, size = 0x8000, scoped, tag = 'input window, operand 6, single buffered']
    #allocation12 [shape = 's32[1]{0}', space=sflag, size = 0x4, scoped, tag = 'scoped memory for tpu_custom_call.1']
    #allocation13 [shape = 'u8[8192]{0}', space=vmem, size = 0x2000, scoped, tag = 'output window, operand 0, single buffered']
    %12 = vsyncpa [#allocation3], 0
    %13 = vsyncpa [#allocation6], 0
    %14 = vsyncpa [#allocation9], 0
    %15 = vsyncpa [#allocation12], 0
    %16 = vsyncpa [#allocation4], 0
    // Predicated region
    $region2: #{tpu_custom_call.1} parent=1 // pred_check
      _
    $region3: #{tpu_custom_call.1} parent=1 // pred_check_branch
      %18 = sbr.rel (0) target = $region5
    $region4: #{tpu_custom_call.1} parent=1 // pred_region
      %s20 = ssub.s32 128, 128
      %21 = vsyncadd [#allocation3], %s20
      %s22 = sshll.u32 [#allocation2], 4
      %s23 = int_to_ptr.vmem [resolvable:$true] %s22
      %28 = dma.hbm_to_vmem [thread:$0]  %s0, 128, %s23, [#allocation3], 64, 64, 4
    $region5: #{tpu_custom_call.1} parent=1 // pred_fallthru
      _
    // Predicated region
    $region6: #{tpu_custom_call.1} parent=1 // pred_check
      _
    $region7: #{tpu_custom_call.1} parent=1 // pred_check_branch
      %30 = sbr.rel (0) target = $region9
    $region8: #{tpu_custom_call.1} parent=1 // pred_region
      %s32 = ssub.s32 64, 64
      %33 = vsyncadd [#allocation6], %s32
      %s35 = sshll.u32 [#allocation5], 4
      %s36 = int_to_ptr.vmem [resolvable:$true] %s35
      %38 = dma.hbm_to_vmem [thread:$0]  %s1, 64, %s36, [#allocation6]
    $region9: #{tpu_custom_call.1} parent=1 // pred_fallthru
      _
    // Predicated region
    $region10: #{tpu_custom_call.1} parent=1 // pred_check
      _
    $region11: #{tpu_custom_call.1} parent=1 // pred_check_branch
      %40 = sbr.rel (0) target = $region13
    $region12: #{tpu_custom_call.1} parent=1 // pred_region
      _
    $region13: #{tpu_custom_call.1} parent=1 // pred_fallthru
      _
    // Predicated region
    $region14: #{tpu_custom_call.1} parent=1 // pred_check
      _
    $region15: #{tpu_custom_call.1} parent=1 // pred_check_branch
      %42 = sbr.rel (0) target = $region17
    $region16: #{tpu_custom_call.1} parent=1 // pred_region
      %s44 = ssub.s32 1024, 1024
      %45 = vsyncadd [#allocation6], %s44
      %s46 = sshll.u32 [#allocation7], 4
      %s47 = int_to_ptr.vmem [resolvable:$true] %s46
      %52 = dma.hbm_to_vmem [thread:$0]  %s3, 1024, %s47, [#allocation6], 64, 64, 4
    $region17: #{tpu_custom_call.1} parent=1 // pred_fallthru
      _
    // Predicated region
    $region18: #{tpu_custom_call.1} parent=1 // pred_check
      _
    $region19: #{tpu_custom_call.1} parent=1 // pred_check_branch
      %54 = sbr.rel (0) target = $region21
    $region20: #{tpu_custom_call.1} parent=1 // pred_region
      %s56 = ssub.s32 1024, 1024
      %57 = vsyncadd [#allocation9], %s56
      %s58 = sshll.u32 [#allocation8], 4
      %s59 = int_to_ptr.vmem [resolvable:$true] %s58
      %64 = dma.hbm_to_vmem [thread:$0]  %s4, 1024, %s59, [#allocation9], 64, 64, 4
    $region21: #{tpu_custom_call.1} parent=1 // pred_fallthru
      _
    // Predicated region
    $region22: #{tpu_custom_call.1} parent=1 // pred_check
      _
    $region23: #{tpu_custom_call.1} parent=1 // pred_check_branch
      %66 = sbr.rel (0) target = $region25
    $region24: #{tpu_custom_call.1} parent=1 // pred_region
      %s68 = ssub.s32 1024, 1024
      %69 = vsyncadd [#allocation9], %s68
      %s70 = sshll.u32 [#allocation10], 4
      %s71 = int_to_ptr.vmem [resolvable:$true] %s70
      %76 = dma.hbm_to_vmem [thread:$0]  %s5, 1024, %s71, [#allocation9], 64, 64, 4
    $region25: #{tpu_custom_call.1} parent=1 // pred_fallthru
      _
    // Predicated region
    $region26: #{tpu_custom_call.1} parent=1 // pred_check
      _
    $region27: #{tpu_custom_call.1} parent=1 // pred_check_branch
      %78 = sbr.rel (0) target = $region29
    $region28: #{tpu_custom_call.1} parent=1 // pred_region
      %s80 = ssub.s32 1024, 1024
      %81 = vsyncadd [#allocation12], %s80
      %s82 = sshll.u32 [#allocation11], 4
      %s83 = int_to_ptr.vmem [resolvable:$true] %s82
      %88 = dma.hbm_to_vmem [thread:$0]  %s6, 1024, %s83, [#allocation12], 64, 64, 4
    $region29: #{tpu_custom_call.1} parent=1 // pred_fallthru
      _
    // Predicated region
    $region30: #{tpu_custom_call.1} parent=1 // pred_check
      _
    $region31: #{tpu_custom_call.1} parent=1 // pred_check_branch
      %90 = sbr.rel (0) target = $region33
    $region32: #{tpu_custom_call.1} parent=1 // pred_region
      %91 = dma.done [#allocation3], 128
    $region33: #{tpu_custom_call.1} parent=1 // pred_fallthru
      _
    // Predicated region
    $region34: #{tpu_custom_call.1} parent=1 // pred_check
      _
    $region35: #{tpu_custom_call.1} parent=1 // pred_check_branch
      %93 = sbr.rel (0) target = $region37
    $region36: #{tpu_custom_call.1} parent=1 // pred_region
      %94 = dma.done [#allocation6], 64
    $region37: #{tpu_custom_call.1} parent=1 // pred_fallthru
      _
    // Predicated region
    $region38: #{tpu_custom_call.1} parent=1 // pred_check
      _
    $region39: #{tpu_custom_call.1} parent=1 // pred_check_branch
      %96 = sbr.rel (0) target = $region41
    $region40: #{tpu_custom_call.1} parent=1 // pred_region
      %97 = dma.done [#allocation6], 1024
    $region41: #{tpu_custom_call.1} parent=1 // pred_fallthru
      _
    // Predicated region
    $region42: #{tpu_custom_call.1} parent=1 // pred_check
      _
    $region43: #{tpu_custom_call.1} parent=1 // pred_check_branch
      %99 = sbr.rel (0) target = $region45
    $region44: #{tpu_custom_call.1} parent=1 // pred_region
      %100 = dma.done [#allocation9], 1024
    $region45: #{tpu_custom_call.1} parent=1 // pred_fallthru
      _
    // Predicated region
    $region46: #{tpu_custom_call.1} parent=1 // pred_check
      _
    $region47: #{tpu_custom_call.1} parent=1 // pred_check_branch
      %102 = sbr.rel (0) target = $region49
    $region48: #{tpu_custom_call.1} parent=1 // pred_region
      %103 = dma.done [#allocation9], 1024
    $region49: #{tpu_custom_call.1} parent=1 // pred_fallthru
      _
    // Predicated region
    $region50: #{tpu_custom_call.1} parent=1 // pred_check
      _
    $region51: #{tpu_custom_call.1} parent=1 // pred_check_branch
      %105 = sbr.rel (0) target = $region53
    $region52: #{tpu_custom_call.1} parent=1 // pred_region
      %106 = dma.done [#allocation12], 1024
    $region53: #{tpu_custom_call.1} parent=1 // pred_fallthru
      _
    %v108 = vld [vmem:[#allocation2] sm:$0xf]
    %v109 = vld [vmem:[#allocation2 + $0x4] sm:$0xf]
    %v110 = vunpack.c.l.bf16 %v108
    %v111 = vunpack.c.l.bf16 %v109
    %v112 = vld [vmem:[#allocation5] sm:$0x1]
    %v113 = vld [vmem:[#allocation5 + $0x1] sm:$0x1]
    %v114 = vld [vmem:[#allocation5 + $0x2] sm:$0x1]
    %115 = vadd.xlane.f32.xlu0 %v110
    %v116 = vpop.xlane.xlu0 %115
    %117 = vadd.xlane.f32.xlu0 %v111
    %v118 = vpop.xlane.xlu0 %117
    %v119 = vmul.f32 %v110, %v110
    %v120 = vmul.f32 %v111, %v111
    %121 = vadd.xlane.f32.xlu0 %v119
    %v122 = vpop.xlane.xlu0 %121
    %123 = vadd.xlane.f32.xlu0 %v120
    %v124 = vpop.xlane.xlu0 %123
    %v125 = vmul.f32 %v116, 0.03125
    %v126 = vmul.f32 %v118, 0.03125
    %v127 = vmul.f32 %v122, 0.03125
    %v128 = vmul.f32 %v124, 0.03125
    %v129 = vmul.f32 %v125, %v125
    %v130 = vmul.f32 %v126, %v126
    %v131 = vsub.f32 %v127, %v129
    %v132 = vsub.f32 %v128, %v130
    %v133 = vmax.f32 %v131, 0.0
    %v134 = vmax.f32 %v132, 0.0
    %v135 = vsub.f32 %v110, %v125
    %v136 = vsub.f32 %v111, %v126
    %v137 = vadd.f32 %v133, 1e-05
    %v138 = vadd.f32 %v134, 1e-05
    %v139 = vrsqrt.pop %v137
    %v140 = vrsqrt.pop %v138
    %v141 = vmul.f32 %v135, %v139
    %v142 = vmul.f32 %v136, %v140
    %v143 = vpack.c.bf16 %v142, %v141
    %v144 = vld [vmem:[#allocation7] sm:$0xf]
    %v145 = vld [vmem:[#allocation7 + $0x4] sm:$0xf]
    %v146 = vld [vmem:[#allocation7 + $0x8] sm:$0xf]
    %v147 = vld [vmem:[#allocation7 + $0xc] sm:$0xf]
    %v148 = vld [vmem:[#allocation7 + $0x10] sm:$0xf]
    %v149 = vld [vmem:[#allocation7 + $0x14] sm:$0xf]
    %v150 = vld [vmem:[#allocation7 + $0x18] sm:$0xf]
    %v151 = vld [vmem:[#allocation7 + $0x1c] sm:$0xf]
    %v152 = vld [vmem:[#allocation7 + $0x20] sm:$0xf]
    %v153 = vld [vmem:[#allocation7 + $0x24] sm:$0xf]
    %v154 = vld [vmem:[#allocation7 + $0x28] sm:$0xf]
    %v155 = vld [vmem:[#allocation7 + $0x2c] sm:$0xf]
    %v156 = vld [vmem:[#allocation7 + $0x30] sm:$0xf]
    %v157 = vld [vmem:[#allocation7 + $0x34] sm:$0xf]
    %v158 = vld [vmem:[#allocation7 + $0x38] sm:$0xf]
    %v159 = vld [vmem:[#allocation7 + $0x3c] sm:$0xf]
    %v160 = vlaneseq
    %v161 = vshrl.u32 %v160, 7
    %v162 = vsub.s32 0, %v161
    %v163 = vrot.slane %v112, %v162
    %v180 = vunpack.c.l.b16 %v144
    %v181 = vunpack.c.l.b16 %v145
    %v182 = vunpack.c.l.b16 %v146
    %v183 = vunpack.c.l.b16 %v147
    %v184 = vunpack.c.l.b16 %v148
    %v185 = vunpack.c.l.b16 %v149
    %v186 = vunpack.c.l.b16 %v150
    %v187 = vunpack.c.l.b16 %v151
    %v188 = vunpack.c.l.b16 %v152
    %v189 = vunpack.c.l.b16 %v153
    %v190 = vunpack.c.l.b16 %v154
    %v191 = vunpack.c.l.b16 %v155
    %v192 = vunpack.c.l.b16 %v156
    %v193 = vunpack.c.l.b16 %v157
    %v194 = vunpack.c.l.b16 %v158
    %v195 = vunpack.c.l.b16 %v159
    %v196 = vpack.c.b16 %v181, %v180
    %v197 = vpack.c.b16 %v183, %v182
    %v198 = vpack.c.b16 %v185, %v184
    %v199 = vpack.c.b16 %v187, %v186
    %v200 = vpack.c.b16 %v189, %v188
    %v201 = vpack.c.b16 %v191, %v190
    %v202 = vpack.c.b16 %v193, %v192
    %v203 = vpack.c.b16 %v195, %v194
    %212 = vmatprep.subr.bf16.mxu0 0
    %213 = vmatpush1.bf16.msra.mxu0 %v196
    %214 = vmatprep.subr.bf16.mxu0 0
    %215 = vmatpush1.bf16.msra.mxu0 %v197
    %216 = vmatprep.subr.bf16.mxu0 0
    %217 = vmatpush1.bf16.msra.mxu0 %v198
    %218 = vmatprep.subr.bf16.mxu0 0
    %219 = vmatpush1.bf16.msra.mxu0 %v199
    %220 = vmatprep.subr.bf16.mxu0 0
    %221 = vmatpush1.bf16.msra.mxu0 %v200
    %222 = vmatprep.subr.bf16.mxu0 0
    %223 = vmatpush1.bf16.msra.mxu0 %v201
    %224 = vmatprep.subr.bf16.mxu0 0
    %225 = vmatpush1.bf16.msra.mxu0 %v202
    %226 = vmatprep.subr.bf16.mxu0 0
    %227 = vmatpush1.bf16.msra.mxu0 %v203
    %228 = vmatprep.subr.bf16.mxu0 0
    %229 = vmatpush1.bf16.msra.mxu0 0
    %230 = vmatprep.subr.bf16.mxu0 0
    %231 = vmatpush1.bf16.msra.mxu0 0
    %232 = vmatprep.subr.bf16.mxu0 0
    %233 = vmatpush1.bf16.msra.mxu0 0
    %234 = vmatprep.subr.bf16.mxu0 0
    %235 = vmatpush1.bf16.msra.mxu0 0
    %236 = vmatprep.subr.bf16.mxu0 0
    %237 = vmatpush1.bf16.msra.mxu0 0
    %238 = vmatprep.subr.bf16.mxu0 0
    %239 = vmatpush1.bf16.msra.mxu0 0
    %240 = vmatprep.subr.bf16.mxu0 0
    %241 = vmatpush1.bf16.msra.mxu0 0
    %242 = vmatprep.subr.bf16.mxu0 0
    %243 = vmatpush1.bf16.msra.mxu0 0
    %244 = vmatprep.mubr.bf16.mxu0 0
    %245 = vmatmul.mubr.bf16.gmra.mrb[0].mxu0 %v143
    %v246 = vpop.f32.mrb[0].mxu0
    %v247 = vadd.f32 %v163, %v246
    %v248 = vpop.f32.mrb[0].mxu0
    %v249 = vpop.f32.mrb[0].mxu0
    %v250 = vadd.f32 %v163, %v249
    %v251 = vpop.f32.mrb[0].mxu0
    %252 = vdwg.mxu0
    %v253 = vxor.u32 %v247, 2147483648
    %v254 = vxor.u32 %v250, 2147483648
    %v255 = vmul.f32 %v253, 1.442695
    %v256 = vpow.pop %v255
    %v257 = vmul.f32 %v254, 1.442695
    %v258 = vpow.pop %v257
    %v259 = vadd.f32 %v256, 1.0
    %v260 = vadd.f32 %v258, 1.0
    %v261 = vrcp.pop %v259
    %v262 = vmul.f32 1.0, %v261
    %v263 = vrcp.pop %v260
    %v264 = vmul.f32 1.0, %v263
    %v265 = vmul.f32 %v247, %v262
    %v266 = vmul.f32 %v250, %v264
    %267 = vadd.xlane.f32.xlu0 %v265
    %v268 = vpop.xlane.xlu0 %267
    %269 = vadd.xlane.f32.xlu0 %v266
    %v270 = vpop.xlane.xlu0 %269
    %v271 = vmul.f32 %v265, %v265
    %v272 = vmul.f32 %v266, %v266
    %273 = vadd.xlane.f32.xlu0 %v271
    %v274 = vpop.xlane.xlu0 %273
    %275 = vadd.xlane.f32.xlu0 %v272
    %v276 = vpop.xlane.xlu0 %275
    %v277 = vmul.f32 %v268, 0.03125
    %v278 = vmul.f32 %v270, 0.03125
    %v279 = vmul.f32 %v274, 0.03125
    %v280 = vmul.f32 %v276, 0.03125
    %v281 = vmul.f32 %v277, %v277
    %v282 = vmul.f32 %v278, %v278
    %v283 = vsub.f32 %v279, %v281
    %v284 = vsub.f32 %v280, %v282
    %v285 = vmax.f32 %v283, 0.0
    %v286 = vmax.f32 %v284, 0.0
    %v287 = vsub.f32 %v265, %v277
    %v288 = vsub.f32 %v266, %v278
    %v289 = vadd.f32 %v285, 1e-05
    %v290 = vadd.f32 %v286, 1e-05
    %v291 = vrsqrt.pop %v289
    %v292 = vrsqrt.pop %v290
    %v293 = vmul.f32 %v287, %v291
    %v294 = vmul.f32 %v288, %v292
    %v295 = vpack.c.bf16 %v294, %v293
    %v296 = vld [vmem:[#allocation8] sm:$0xf]
    %v297 = vld [vmem:[#allocation8 + $0x4] sm:$0xf]
    %v298 = vld [vmem:[#allocation8 + $0x8] sm:$0xf]
    %v299 = vld [vmem:[#allocation8 + $0xc] sm:$0xf]
    %v300 = vld [vmem:[#allocation8 + $0x10] sm:$0xf]
    %v301 = vld [vmem:[#allocation8 + $0x14] sm:$0xf]
    %v302 = vld [vmem:[#allocation8 + $0x18] sm:$0xf]
    %v303 = vld [vmem:[#allocation8 + $0x1c] sm:$0xf]
    %v304 = vld [vmem:[#allocation8 + $0x20] sm:$0xf]
    %v305 = vld [vmem:[#allocation8 + $0x24] sm:$0xf]
    %v306 = vld [vmem:[#allocation8 + $0x28] sm:$0xf]
    %v307 = vld [vmem:[#allocation8 + $0x2c] sm:$0xf]
    %v308 = vld [vmem:[#allocation8 + $0x30] sm:$0xf]
    %v309 = vld [vmem:[#allocation8 + $0x34] sm:$0xf]
    %v310 = vld [vmem:[#allocation8 + $0x38] sm:$0xf]
    %v311 = vld [vmem:[#allocation8 + $0x3c] sm:$0xf]
    %v312 = vlaneseq
    %v313 = vshrl.u32 %v312, 7
    %v314 = vsub.s32 0, %v313
    %v315 = vrot.slane %v113, %v314
    %v332 = vunpack.c.l.b16 %v296
    %v333 = vunpack.c.l.b16 %v297
    %v334 = vunpack.c.l.b16 %v298
    %v335 = vunpack.c.l.b16 %v299
    %v336 = vunpack.c.l.b16 %v300
    %v337 = vunpack.c.l.b16 %v301
    %v338 = vunpack.c.l.b16 %v302
    %v339 = vunpack.c.l.b16 %v303
    %v340 = vunpack.c.l.b16 %v304
    %v341 = vunpack.c.l.b16 %v305
    %v342 = vunpack.c.l.b16 %v306
    %v343 = vunpack.c.l.b16 %v307
    %v344 = vunpack.c.l.b16 %v308
    %v345 = vunpack.c.l.b16 %v309
    %v346 = vunpack.c.l.b16 %v310
    %v347 = vunpack.c.l.b16 %v311
    %v348 = vpack.c.b16 %v333, %v332
    %v349 = vpack.c.b16 %v335, %v334
    %v350 = vpack.c.b16 %v337, %v336
    %v351 = vpack.c.b16 %v339, %v338
    %v352 = vpack.c.b16 %v341, %v340
    %v353 = vpack.c.b16 %v343, %v342
    %v354 = vpack.c.b16 %v345, %v344
    %v355 = vpack.c.b16 %v347, %v346
    %364 = vmatprep.subr.bf16.mxu0 0
    %365 = vmatpush1.bf16.msra.mxu0 %v348
    %366 = vmatprep.subr.bf16.mxu0 0
    %367 = vmatpush1.bf16.msra.mxu0 %v349
    %368 = vmatprep.subr.bf16.mxu0 0
    %369 = vmatpush1.bf16.msra.mxu0 %v350
    %370 = vmatprep.subr.bf16.mxu0 0
    %371 = vmatpush1.bf16.msra.mxu0 %v351
    %372 = vmatprep.subr.bf16.mxu0 0
    %373 = vmatpush1.bf16.msra.mxu0 %v352
    %374 = vmatprep.subr.bf16.mxu0 0
    %375 = vmatpush1.bf16.msra.mxu0 %v353
    %376 = vmatprep.subr.bf16.mxu0 0
    %377 = vmatpush1.bf16.msra.mxu0 %v354
    %378 = vmatprep.subr.bf16.mxu0 0
    %379 = vmatpush1.bf16.msra.mxu0 %v355
    %380 = vmatprep.subr.bf16.mxu0 0
    %381 = vmatpush1.bf16.msra.mxu0 0
    %382 = vmatprep.subr.bf16.mxu0 0
    %383 = vmatpush1.bf16.msra.mxu0 0
    %384 = vmatprep.subr.bf16.mxu0 0
    %385 = vmatpush1.bf16.msra.mxu0 0
    %386 = vmatprep.subr.bf16.mxu0 0
    %387 = vmatpush1.bf16.msra.mxu0 0
    %388 = vmatprep.subr.bf16.mxu0 0
    %389 = vmatpush1.bf16.msra.mxu0 0
    %390 = vmatprep.subr.bf16.mxu0 0
    %391 = vmatpush1.bf16.msra.mxu0 0
    %392 = vmatprep.subr.bf16.mxu0 0
    %393 = vmatpush1.bf16.msra.mxu0 0
    %394 = vmatprep.subr.bf16.mxu0 0
    %395 = vmatpush1.bf16.msra.mxu0 0
    %396 = vmatprep.mubr.bf16.mxu0 0
    %397 = vmatmul.mubr.bf16.gmra.mrb[0].mxu0 %v295
    %v398 = vpop.f32.mrb[0].mxu0
    %v399 = vadd.f32 %v315, %v398
    %v400 = vpop.f32.mrb[0].mxu0
    %v401 = vpop.f32.mrb[0].mxu0
    %v402 = vadd.f32 %v315, %v401
    %v403 = vpop.f32.mrb[0].mxu0
    %404 = vdwg.mxu0
    %v405 = vxor.u32 %v399, 2147483648
    %v406 = vxor.u32 %v402, 2147483648
    %v407 = vmul.f32 %v405, 1.442695
    %v408 = vpow.pop %v407
    %v409 = vmul.f32 %v406, 1.442695
    %v410 = vpow.pop %v409
    %v411 = vadd.f32 %v408, 1.0
    %v412 = vadd.f32 %v410, 1.0
    %v413 = vrcp.pop %v411
    %v414 = vmul.f32 1.0, %v413
    %v415 = vrcp.pop %v412
    %v416 = vmul.f32 1.0, %v415
    %v417 = vmul.f32 %v399, %v414
    %v418 = vmul.f32 %v402, %v416
    %v419 = vadd.f32 %v265, %v417
    %v420 = vadd.f32 %v266, %v418
    %421 = vadd.xlane.f32.xlu0 %v419
    %v422 = vpop.xlane.xlu0 %421
    %423 = vadd.xlane.f32.xlu0 %v420
    %v424 = vpop.xlane.xlu0 %423
    %v425 = vmul.f32 %v419, %v419
    %v426 = vmul.f32 %v420, %v420
    %427 = vadd.xlane.f32.xlu0 %v425
    %v428 = vpop.xlane.xlu0 %427
    %429 = vadd.xlane.f32.xlu0 %v426
    %v430 = vpop.xlane.xlu0 %429
    %v431 = vmul.f32 %v422, 0.03125
    %v432 = vmul.f32 %v424, 0.03125
    %v433 = vmul.f32 %v428, 0.03125
    %v434 = vmul.f32 %v430, 0.03125
    %v435 = vmul.f32 %v431, %v431
    %v436 = vmul.f32 %v432, %v432
    %v437 = vsub.f32 %v433, %v435
    %v438 = vsub.f32 %v434, %v436
    %v439 = vmax.f32 %v437, 0.0
    %v440 = vmax.f32 %v438, 0.0
    %v441 = vsub.f32 %v419, %v431
    %v442 = vsub.f32 %v420, %v432
    %v443 = vadd.f32 %v439, 1e-05
    %v444 = vadd.f32 %v440, 1e-05
    %v445 = vrsqrt.pop %v443
    %v446 = vrsqrt.pop %v444
    %v447 = vmul.f32 %v441, %v445
    %v448 = vmul.f32 %v442, %v446
    %v449 = vpack.c.bf16 %v448, %v447
    %v450 = vld [vmem:[#allocation10] sm:$0xf]
    %v451 = vld [vmem:[#allocation10 + $0x4] sm:$0xf]
    %v452 = vld [vmem:[#allocation10 + $0x8] sm:$0xf]
    %v453 = vld [vmem:[#allocation10 + $0xc] sm:$0xf]
    %v454 = vld [vmem:[#allocation10 + $0x10] sm:$0xf]
    %v455 = vld [vmem:[#allocation10 + $0x14] sm:$0xf]
    %v456 = vld [vmem:[#allocation10 + $0x18] sm:$0xf]
    %v457 = vld [vmem:[#allocation10 + $0x1c] sm:$0xf]
    %v458 = vld [vmem:[#allocation10 + $0x20] sm:$0xf]
    %v459 = vld [vmem:[#allocation10 + $0x24] sm:$0xf]
    %v460 = vld [vmem:[#allocation10 + $0x28] sm:$0xf]
    %v461 = vld [vmem:[#allocation10 + $0x2c] sm:$0xf]
    %v462 = vld [vmem:[#allocation10 + $0x30] sm:$0xf]
    %v463 = vld [vmem:[#allocation10 + $0x34] sm:$0xf]
    %v464 = vld [vmem:[#allocation10 + $0x38] sm:$0xf]
    %v465 = vld [vmem:[#allocation10 + $0x3c] sm:$0xf]
    %v466 = vlaneseq
    %v467 = vshrl.u32 %v466, 7
    %v468 = vsub.s32 0, %v467
    %v469 = vrot.slane %v114, %v468
    %v486 = vunpack.c.l.b16 %v450
    %v487 = vunpack.c.l.b16 %v451
    %v488 = vunpack.c.l.b16 %v452
    %v489 = vunpack.c.l.b16 %v453
    %v490 = vunpack.c.l.b16 %v454
    %v491 = vunpack.c.l.b16 %v455
    %v492 = vunpack.c.l.b16 %v456
    %v493 = vunpack.c.l.b16 %v457
    %v494 = vunpack.c.l.b16 %v458
    %v495 = vunpack.c.l.b16 %v459
    %v496 = vunpack.c.l.b16 %v460
    %v497 = vunpack.c.l.b16 %v461
    %v498 = vunpack.c.l.b16 %v462
    %v499 = vunpack.c.l.b16 %v463
    %v500 = vunpack.c.l.b16 %v464
    %v501 = vunpack.c.l.b16 %v465
    %v502 = vpack.c.b16 %v487, %v486
    %v503 = vpack.c.b16 %v489, %v488
    %v504 = vpack.c.b16 %v491, %v490
    %v505 = vpack.c.b16 %v493, %v492
    %v506 = vpack.c.b16 %v495, %v494
    %v507 = vpack.c.b16 %v497, %v496
    %v508 = vpack.c.b16 %v499, %v498
    %v509 = vpack.c.b16 %v501, %v500
    %518 = vmatprep.subr.bf16.mxu0 0
    %519 = vmatpush1.bf16.msra.mxu0 %v502
    %520 = vmatprep.subr.bf16.mxu0 0
    %521 = vmatpush1.bf16.msra.mxu0 %v503
    %522 = vmatprep.subr.bf16.mxu0 0
    %523 = vmatpush1.bf16.msra.mxu0 %v504
    %524 = vmatprep.subr.bf16.mxu0 0
    %525 = vmatpush1.bf16.msra.mxu0 %v505
    %526 = vmatprep.subr.bf16.mxu0 0
    %527 = vmatpush1.bf16.msra.mxu0 %v506
    %528 = vmatprep.subr.bf16.mxu0 0
    %529 = vmatpush1.bf16.msra.mxu0 %v507
    %530 = vmatprep.subr.bf16.mxu0 0
    %531 = vmatpush1.bf16.msra.mxu0 %v508
    %532 = vmatprep.subr.bf16.mxu0 0
    %533 = vmatpush1.bf16.msra.mxu0 %v509
    %534 = vmatprep.subr.bf16.mxu0 0
    %535 = vmatpush1.bf16.msra.mxu0 0
    %536 = vmatprep.subr.bf16.mxu0 0
    %537 = vmatpush1.bf16.msra.mxu0 0
    %538 = vmatprep.subr.bf16.mxu0 0
    %539 = vmatpush1.bf16.msra.mxu0 0
    %540 = vmatprep.subr.bf16.mxu0 0
    %541 = vmatpush1.bf16.msra.mxu0 0
    %542 = vmatprep.subr.bf16.mxu0 0
    %543 = vmatpush1.bf16.msra.mxu0 0
    %544 = vmatprep.subr.bf16.mxu0 0
    %545 = vmatpush1.bf16.msra.mxu0 0
    %546 = vmatprep.subr.bf16.mxu0 0
    %547 = vmatpush1.bf16.msra.mxu0 0
    %548 = vmatprep.subr.bf16.mxu0 0
    %549 = vmatpush1.bf16.msra.mxu0 0
    %550 = vmatprep.mubr.bf16.mxu0 0
    %551 = vmatmul.mubr.bf16.gmra.mrb[0].mxu0 %v449
    %v552 = vpop.f32.mrb[0].mxu0
    %v553 = vadd.f32 %v469, %v552
    %v554 = vpop.f32.mrb[0].mxu0
    %v555 = vpop.f32.mrb[0].mxu0
    %v556 = vadd.f32 %v469, %v555
    %v557 = vpop.f32.mrb[0].mxu0
    %558 = vdwg.mxu0
    %v559 = vxor.u32 %v553, 2147483648
    %v560 = vxor.u32 %v556, 2147483648
    %v561 = vmul.f32 %v559, 1.442695
    %v562 = vpow.pop %v561
    %v563 = vmul.f32 %v560, 1.442695
    %v564 = vpow.pop %v563
    %v565 = vadd.f32 %v562, 1.0
    %v566 = vadd.f32 %v564, 1.0
    %v567 = vrcp.pop %v565
    %v568 = vmul.f32 1.0, %v567
    %v569 = vrcp.pop %v566
    %v570 = vmul.f32 1.0, %v569
    %v571 = vmul.f32 %v553, %v568
    %v572 = vmul.f32 %v556, %v570
    %v573 = vadd.f32 %v419, %v571
    %v574 = vadd.f32 %v420, %v572
    %575 = vadd.xlane.f32.xlu0 %v573
    %v576 = vpop.xlane.xlu0 %575
    %577 = vadd.xlane.f32.xlu0 %v574
    %v578 = vpop.xlane.xlu0 %577
    %v579 = vmul.f32 %v573, %v573
    %v580 = vmul.f32 %v574, %v574
    %581 = vadd.xlane.f32.xlu0 %v579
    %v582 = vpop.xlane.xlu0 %581
    %583 = vadd.xlane.f32.xlu0 %v580
    %v584 = vpop.xlane.xlu0 %583
    %v585 = vmul.f32 %v576, 0.03125
    %v586 = vmul.f32 %v578, 0.03125
    %v587 = vmul.f32 %v582, 0.03125
    %v588 = vmul.f32 %v584, 0.03125
    %v589 = vmul.f32 %v585, %v585
    %v590 = vmul.f32 %v586, %v586
    %v591 = vsub.f32 %v587, %v589
    %v592 = vsub.f32 %v588, %v590
    %v593 = vmax.f32 %v591, 0.0
    %v594 = vmax.f32 %v592, 0.0
    %v595 = vsub.f32 %v573, %v585
    %v596 = vsub.f32 %v574, %v586
    %v597 = vadd.f32 %v593, 1e-05
    %v598 = vadd.f32 %v594, 1e-05
    %v599 = vrsqrt.pop %v597
    %v600 = vrsqrt.pop %v598
    %v601 = vmul.f32 %v595, %v599
    %v602 = vmul.f32 %v596, %v600
    %v603 = vpack.c.bf16 %v602, %v601
    %v604 = vld [vmem:[#allocation11] sm:$0xf]
    %v605 = vld [vmem:[#allocation11 + $0x4] sm:$0xf]
    %v606 = vld [vmem:[#allocation11 + $0x8] sm:$0xf]
    %v607 = vld [vmem:[#allocation11 + $0xc] sm:$0xf]
    %v608 = vld [vmem:[#allocation11 + $0x10] sm:$0xf]
    %v609 = vld [vmem:[#allocation11 + $0x14] sm:$0xf]
    %v610 = vld [vmem:[#allocation11 + $0x18] sm:$0xf]
    %v611 = vld [vmem:[#allocation11 + $0x1c] sm:$0xf]
    %v612 = vld [vmem:[#allocation11 + $0x20] sm:$0xf]
    %v613 = vld [vmem:[#allocation11 + $0x24] sm:$0xf]
    %v614 = vld [vmem:[#allocation11 + $0x28] sm:$0xf]
    %v615 = vld [vmem:[#allocation11 + $0x2c] sm:$0xf]
    %v616 = vld [vmem:[#allocation11 + $0x30] sm:$0xf]
    %v617 = vld [vmem:[#allocation11 + $0x34] sm:$0xf]
    %v618 = vld [vmem:[#allocation11 + $0x38] sm:$0xf]
    %v619 = vld [vmem:[#allocation11 + $0x3c] sm:$0xf]
    %v620 = vld [vmem:[%s2] sm:$0x1]
    %v622 = vlaneseq
    %v623 = vshrl.u32 %v622, 7
    %v624 = vsub.s32 0, %v623
    %v625 = vrot.slane %v620, %v624
    %v643 = vunpack.c.l.b16 %v604
    %v644 = vunpack.c.l.b16 %v605
    %v645 = vunpack.c.l.b16 %v606
    %v646 = vunpack.c.l.b16 %v607
    %v647 = vunpack.c.l.b16 %v608
    %v648 = vunpack.c.l.b16 %v609
    %v649 = vunpack.c.l.b16 %v610
    %v650 = vunpack.c.l.b16 %v611
    %v651 = vunpack.c.l.b16 %v612
    %v652 = vunpack.c.l.b16 %v613
    %v653 = vunpack.c.l.b16 %v614
    %v654 = vunpack.c.l.b16 %v615
    %v655 = vunpack.c.l.b16 %v616
    %v656 = vunpack.c.l.b16 %v617
    %v657 = vunpack.c.l.b16 %v618
    %v658 = vunpack.c.l.b16 %v619
    %v659 = vpack.c.b16 %v644, %v643
    %v660 = vpack.c.b16 %v646, %v645
    %v661 = vpack.c.b16 %v648, %v647
    %v662 = vpack.c.b16 %v650, %v649
    %v663 = vpack.c.b16 %v652, %v651
    %v664 = vpack.c.b16 %v654, %v653
    %v665 = vpack.c.b16 %v656, %v655
    %v666 = vpack.c.b16 %v658, %v657
    %675 = vmatprep.subr.bf16.mxu0 0
    %676 = vmatpush1.bf16.msra.mxu0 %v659
    %677 = vmatprep.subr.bf16.mxu0 0
    %678 = vmatpush1.bf16.msra.mxu0 %v660
    %679 = vmatprep.subr.bf16.mxu0 0
    %680 = vmatpush1.bf16.msra.mxu0 %v661
    %681 = vmatprep.subr.bf16.mxu0 0
    %682 = vmatpush1.bf16.msra.mxu0 %v662
    %683 = vmatprep.subr.bf16.mxu0 0
    %684 = vmatpush1.bf16.msra.mxu0 %v663
    %685 = vmatprep.subr.bf16.mxu0 0
    %686 = vmatpush1.bf16.msra.mxu0 %v664
    %687 = vmatprep.subr.bf16.mxu0 0
    %688 = vmatpush1.bf16.msra.mxu0 %v665
    %689 = vmatprep.subr.bf16.mxu0 0
    %690 = vmatpush1.bf16.msra.mxu0 %v666
    %691 = vmatprep.subr.bf16.mxu0 0
    %692 = vmatpush1.bf16.msra.mxu0 0
    %693 = vmatprep.subr.bf16.mxu0 0
    %694 = vmatpush1.bf16.msra.mxu0 0
    %695 = vmatprep.subr.bf16.mxu0 0
    %696 = vmatpush1.bf16.msra.mxu0 0
    %697 = vmatprep.subr.bf16.mxu0 0
    %698 = vmatpush1.bf16.msra.mxu0 0
    %699 = vmatprep.subr.bf16.mxu0 0
    %700 = vmatpush1.bf16.msra.mxu0 0
    %701 = vmatprep.subr.bf16.mxu0 0
    %702 = vmatpush1.bf16.msra.mxu0 0
    %703 = vmatprep.subr.bf16.mxu0 0
    %704 = vmatpush1.bf16.msra.mxu0 0
    %705 = vmatprep.subr.bf16.mxu0 0
    %706 = vmatpush1.bf16.msra.mxu0 0
    %707 = vmatprep.mubr.bf16.mxu0 0
    %708 = vmatmul.mubr.bf16.gmra.mrb[0].mxu0 %v603
    %v709 = vpop.f32.mrb[0].mxu0
    %v710 = vadd.f32 %v625, %v709
    %v711 = vpop.f32.mrb[0].mxu0
    %v712 = vpop.f32.mrb[0].mxu0
    %v713 = vadd.f32 %v625, %v712
    %v714 = vpop.f32.mrb[0].mxu0
    %715 = vdwg.mxu0
    %716 = vst [vmem:[#allocation13] sm:$0xff] %v710
    %717 = vst [vmem:[#allocation13 + $0x8] sm:$0xff] %v713
    // Predicated region
    $region54: #{tpu_custom_call.1} parent=1 // pred_check
      _
    $region55: #{tpu_custom_call.1} parent=1 // pred_check_branch
      %719 = sbr.rel (0) target = $region57
    $region56: #{tpu_custom_call.1} parent=1 // pred_region
      %s721 = ssub.s32 256, 256
      %722 = vsyncadd [#allocation4], %s721
      %s723 = sshll.u32 [#allocation13], 4
      %s724 = int_to_ptr.vmem [resolvable:$true] %s723
      %729 = dma.vmem_to_hbm [thread:$0]  %s724, 256, %s7, [#allocation4], 128, 128, 8
    $region57: #{tpu_custom_call.1} parent=1 // pred_fallthru
      _
    // Predicated region
    $region58: #{tpu_custom_call.1} parent=1 // pred_check
      _
    $region59: #{tpu_custom_call.1} parent=1 // pred_check_branch
      %731 = sbr.rel (0) target = $region61
    $region60: #{tpu_custom_call.1} parent=1 // pred_region
      %732 = dma.done [#allocation4], 256
    $region61: #{tpu_custom_call.1} parent=1 // pred_fallthru
      _
    %733 = vsyncpa [#allocation3], 1
    %734 = vsyncpa [#allocation6], 1
    %735 = vsyncpa [#allocation9], 1
    %736 = vsyncpa [#allocation12], 1
    %737 = vsyncpa [#allocation4], 1

</llo_original>
